<compile_context>
chip_gen: v5e
topology: v5e:2x2
jax: 0.10.0
libtpu: 0.0.40
codegen_flags: <defaults>
</compile_context>

<pallas_src>
import functools

import jax
import jax.numpy as jnp
from jax import lax
from jax.experimental import pallas as pl
from jax.experimental.pallas import tpu as pltpu

# Finite mask value: avoids exp(-inf - (-inf)) NaNs if a row of a tile is
# ever fully masked.
_MASK_VALUE = -1e30
# 48 MiB scoped VMEM: fits v5e/v6e (128 MiB physical) and v7x (64 MiB) with
# headroom.  At the shapes used here all tiles are a few MiB.
_VMEM_LIMIT = 48 * 1024 * 1024


def _qkv_kernel(x_ref, w_ref, b_ref, q_ref, k_ref, v_ref,
                *, num_heads, d_head, scale, mxu_dtype):
    """One (1, tm, D) row tile: x @ Wqkv + b -> per-head-major q/k/v slabs."""
    d_model = num_heads * d_head
    x = x_ref[0].astype(mxu_dtype)                            # (tm, D)
    # Wqkv / bqkv are pre-cast in the wrapper (no per-grid-step casts here).
    res = jnp.dot(x, w_ref[...], preferred_element_type=jnp.float32) + b_ref[...]
    # Head split (lane-offset slices) done ONCE per element here, so the
    # attention kernel never pays per-kv-step relayout.  Softmax scale
    # (d_model**-0.5, as in the PyTorch module) is folded into q.
    for h in range(num_heads):
        lo = h * d_head
        q_ref[0, h] = (res[:, lo:lo + d_head] * scale).astype(q_ref.dtype)
        k_ref[0, h] = res[:, d_model + lo:d_model + lo + d_head].astype(k_ref.dtype)
        v_ref[0, h] = res[:, 2 * d_model + lo:2 * d_model + lo + d_head].astype(v_ref.dtype)


def _flash_mha_kernel(q_ref, k_ref, v_ref, wo_ref, bo_ref, o_ref,
                      m_ref, l_ref, acc_ref, *, mxu_dtype):
    """Grid point = (batch, q-block, kv-block).  All heads batched inside."""
    num_heads = q_ref.shape[1]
    tq = q_ref.shape[2]
    tk = k_ref.shape[2]

    qi = pl.program_id(1)
    ki = pl.program_id(2)
    nk = pl.num_programs(2)

    @pl.when(ki == 0)
    def _init():
        m_ref[...] = jnp.full_like(m_ref, -jnp.inf)
        l_ref[...] = jnp.zeros_like(l_ref)
        acc_ref[...] = jnp.zeros_like(acc_ref)

    # Causal block skip: the whole KV block lies above the diagonal iff its
    # smallest column index exceeds the largest row index of this Q block.
    # (The K/V index_maps also clamp the block index so skipped blocks are
    # never DMA'd — this guard only controls compute.)
    @pl.when(ki * tk <= qi * tq + (tq - 1))
    def _compute():
        q = q_ref[0]          # (H, tq, dh) — scale already folded in
        k = k_ref[0]          # (H, tk, dh)
        v = v_ref[0]          # (H, tk, dh)

        # Head-batched QK^T on the MXU, f32 accumulation.
        s = jnp.einsum('hqd,hkd->hqk', q, k,
                       preferred_element_type=jnp.float32)      # (H, tq, tk)

        row = lax.broadcasted_iota(jnp.int32, (tq, tk), 0) + qi * tq
        col = lax.broadcasted_iota(jnp.int32, (tq, tk), 1) + ki * tk
        s = jnp.where((row >= col)[None, :, :], s, _MASK_VALUE)

        # Online softmax bookkeeping in f32 (safe on v5e: no bf16 VPU/EUP).
        m_prev = m_ref[...]                                      # (H, tq, 1)
        m_new = jnp.maximum(m_prev, jnp.max(s, axis=-1, keepdims=True))
        alpha = jnp.exp(m_prev - m_new)
        p = jnp.exp(s - m_new)
        l_ref[...] = alpha * l_ref[...] + jnp.sum(p, axis=-1, keepdims=True)
        m_ref[...] = m_new
        # Per-head-major acc update — no concatenate, bounded live ranges.
        acc_ref[...] = alpha * acc_ref[...] + jnp.einsum(
            'hqk,hkd->hqd', p.astype(mxu_dtype), v,
            preferred_element_type=jnp.float32)

    @pl.when(ki == nk - 1)
    def _finalize():
        l = l_ref[...]
        inv = pl.reciprocal(l, approx=True)       # EUP seed (free slot)
        inv = inv * (2.0 - l * inv)               # one Newton step -> ~f32 acc
        normed = (acc_ref[...] * inv).astype(mxu_dtype)          # (H, tq, dh)
        # Fused output projection: Wo pre-split per head as (H, dh, D) so no
        # transpose of the per-head-major acc is needed; stored tile is
        # lane-dense (last dim = d_model).
        out = jnp.dot(normed[0], wo_ref[0], preferred_element_type=jnp.float32)
        for h in range(1, num_heads):
            out = out + jnp.dot(normed[h], wo_ref[h],
                                preferred_element_type=jnp.float32)
        o_ref[0] = (out + bo_ref[...]).astype(o_ref.dtype)


def multi_head_attention(x, params, *, tq=256, tk=256, row_tile=512,
                         mxu_dtype=jnp.bfloat16):
    """x: (B, T, D) float32.  params: stacked per-head weights (see __main__).

    mxu_dtype=jnp.bfloat16 (default): bf16 MXU operands + bf16 q/k/v
    intermediates, f32 accumulation — the fast path on all generations.
    Pass jnp.float32 for bit-tighter agreement with a f32 reference.
    """
    B, T, D = x.shape
    Wq, Wk, Wv = params["Wq"], params["Wk"], params["Wv"]      # (H, D, dh)
    bq, bk, bv = params["bq"], params["bk"], params["bv"]      # (H, dh)
    Wo, bo = params["Wo"], params["bo"]                        # (D, D), (D,)
    H, _, dh = Wq.shape
    assert H * dh == D, "d_model must equal n_head * d_head"

    # ---- pack per-head projections into one wide (D, 3D) weight ----
    def cat_heads(W):   # (H, D, dh) -> (D, H*dh); column block h == head h
        return jnp.transpose(W, (1, 0, 2)).reshape(D, H * dh)

    Wqkv = jnp.concatenate(
        [cat_heads(Wq), cat_heads(Wk), cat_heads(Wv)], axis=-1).astype(mxu_dtype)
    bqkv = jnp.concatenate([bq.reshape(-1), bk.reshape(-1),
                            bv.reshape(-1)]).reshape(1, 3 * D).astype(jnp.float32)
    Wo_h = Wo.reshape(H, dh, D).astype(mxu_dtype)   # row block h == head h
    bo2 = bo.reshape(1, D).astype(jnp.float32)

    scale = float(D) ** -0.5   # PyTorch module scales by d_model**-0.5

    tm = min(row_tile, T)
    tq = min(tq, T)
    tk = min(tk, T)
    assert T % tm == 0, "T must be divisible by the row tile"
    assert T % tq == 0 and T % tk == 0, "T must be divisible by tq and tk"

    # ---- Kernel 1: fused QKV projection -> bf16, per-head-major (B,H,T,dh) ----
    q, k, v = pl.pallas_call(
        functools.partial(_qkv_kernel, num_heads=H, d_head=dh, scale=scale,
                          mxu_dtype=mxu_dtype),
        out_shape=(jax.ShapeDtypeStruct((B, H, T, dh), mxu_dtype),) * 3,
        grid_spec=pltpu.PrefetchScalarGridSpec(
            num_scalar_prefetch=0,
            grid=(B, T // tm),
            in_specs=[
                pl.BlockSpec((1, tm, D), lambda b, i: (b, i, 0)),      # x rows
                pl.BlockSpec((D, 3 * D), lambda b, i: (0, 0)),         # Wqkv (resident)
                pl.BlockSpec((1, 3 * D), lambda b, i: (0, 0)),         # bqkv
            ],
            out_specs=(
                pl.BlockSpec((1, H, tm, dh), lambda b, i: (b, 0, i, 0)),
                pl.BlockSpec((1, H, tm, dh), lambda b, i: (b, 0, i, 0)),
                pl.BlockSpec((1, H, tm, dh), lambda b, i: (b, 0, i, 0)),
            ),
        ),
        compiler_params=pltpu.CompilerParams(
            dimension_semantics=("parallel", "parallel"),
            vmem_limit_bytes=_VMEM_LIMIT),
    )(x, Wqkv, bqkv)

    # K/V index map: clamp the kv block index to the last block that
    # intersects the causal diagonal for this q block, so blocks strictly
    # above the diagonal are never re-DMA'd (Pallas skips the fetch when the
    # block index repeats).
    def kv_index(b, i, j):
        kmax = (i * tq + tq - 1) // tk
        return (b, 0, jnp.minimum(j, kmax), 0)

    # ---- Kernel 2: flash attention (head-batched) + fused output projection ----
    out = pl.pallas_call(
        functools.partial(_flash_mha_kernel, mxu_dtype=mxu_dtype),
        out_shape=jax.ShapeDtypeStruct((B, T, D), jnp.float32),
        grid_spec=pltpu.PrefetchScalarGridSpec(
            num_scalar_prefetch=0,
            grid=(B, T // tq, T // tk),
            in_specs=[
                pl.BlockSpec((1, H, tq, dh), lambda b, i, j: (b, 0, i, 0)),   # q
                pl.BlockSpec((1, H, tk, dh), kv_index),                       # k
                pl.BlockSpec((1, H, tk, dh), kv_index),                       # v
                pl.BlockSpec((H, dh, D), lambda b, i, j: (0, 0, 0)),          # Wo (resident)
                pl.BlockSpec((1, D), lambda b, i, j: (0, 0)),                 # bo
            ],
            out_specs=pl.BlockSpec((1, tq, D), lambda b, i, j: (b, i, 0)),
            scratch_shapes=[
                pltpu.VMEM((H, tq, 1), jnp.float32),    # running max per head
                pltpu.VMEM((H, tq, 1), jnp.float32),    # running denom per head
                pltpu.VMEM((H, tq, dh), jnp.float32),   # un-normalized head outputs
            ],
        ),
        compiler_params=pltpu.CompilerParams(
            # (B, T//tq) parallel axes keep both v7x TensorCores busy; the kv
            # axis carries the online-softmax state and must be "arbitrary".
            dimension_semantics=("parallel", "parallel", "arbitrary"),
            vmem_limit_bytes=_VMEM_LIMIT),
    )(q, k, v, Wo_h, bo2)

    return out
    # TODO(synk): nn.Dropout is constructed but never applied in the PyTorch
    # forward, so it is intentionally omitted here.


def _reference(x, params):
    """Pure-JAX f32 reference mirroring the PyTorch forward."""
    B, T, D = x.shape
    Wq, Wk, Wv = params["Wq"], params["Wk"], params["Wv"]
    bq, bk, bv = params["bq"], params["bk"], params["bv"]
    outs = []
    for h in range(Wq.shape[0]):
        q = x @ Wq[h] + bq[h]
        k = x @ Wk[h] + bk[h]
        v = x @ Wv[h] + bv[h]
        score = q @ jnp.swapaxes(k, -2, -1) * (D ** -0.5)
        mask = jnp.tril(jnp.ones((T, T), dtype=bool))
        score = jnp.where(mask, score, -jnp.inf)
        score = jax.nn.softmax(score, axis=-1)
        outs.append(score @ v)
    cat = jnp.concatenate(outs, axis=-1)
    return cat @ params["Wo"] + params["bo"]


if __name__ == "__main__":
    # Small shapes consistent with the module (d_model=512, n_head=8, T=512
    # scaled down): B=2, T=256, d_model=128, n_head=4 -> d_head=32.
    # tq=tk=128 gives 2x2 q/kv blocks, exercising the online softmax, the
    # causal block-skip, and the clamped K/V index map.
    B, T, D, H = 2, 256, 128, 4
    dh = D // H

    key = jax.random.PRNGKey(0)
    ks = jax.random.split(key, 9)
    w_scale = 0.1
    params = {
        "Wq": jax.random.normal(ks[0], (H, D, dh), jnp.float32) * w_scale,
        "Wk": jax.random.normal(ks[1], (H, D, dh), jnp.float32) * w_scale,
        "Wv": jax.random.normal(ks[2], (H, D, dh), jnp.float32) * w_scale,
        "bq": jax.random.normal(ks[3], (H, dh), jnp.float32) * w_scale,
        "bk": jax.random.normal(ks[4], (H, dh), jnp.float32) * w_scale,
        "bv": jax.random.normal(ks[5], (H, dh), jnp.float32) * w_scale,
        "Wo": jax.random.normal(ks[6], (D, D), jnp.float32) * w_scale,
        "bo": jax.random.normal(ks[7], (D,), jnp.float32) * w_scale,
    }
    x = jax.random.normal(ks[8], (B, T, D), jnp.float32)

    ref = _reference(x, params)

    # Default fast path: bf16 MXU operands + bf16 q/k/v intermediates.
    # Looser tolerance is the intentional accuracy/throughput tradeoff.
    out = multi_head_attention(x, params, tq=128, tk=128)
    out = jax.block_until_ready(out)
    assert out.shape == (B, T, D)
    assert jnp.allclose(out, ref, atol=1e-1, rtol=1e-1), "bf16 path mismatch"

    # f32 MXU path: tight check that the flash algorithm itself is exact.
    out_f32 = multi_head_attention(x, params, tq=128, tk=128,
                                   mxu_dtype=jnp.float32)
    out_f32 = jax.block_until_ready(out_f32)
    assert jnp.allclose(out_f32, ref, atol=1e-3, rtol=1e-3), "f32 path mismatch"

    print("KERNEL_OK")
</pallas_src>

<mosaic_0001>
module attributes {stable_mosaic.version = 11 : i64} {
  func.func @_qkv_kernel(%arg0: i32, %arg1: i32, %arg2: memref<1x256x128xf32, #tpu.memory_space<vmem>>, %arg3: memref<128x384xbf16, #tpu.memory_space<vmem>>, %arg4: memref<1x384xf32, #tpu.memory_space<vmem>>, %arg5: memref<1x4x256x32xbf16, #tpu.memory_space<vmem>>, %arg6: memref<1x4x256x32xbf16, #tpu.memory_space<vmem>>, %arg7: memref<1x4x256x32xbf16, #tpu.memory_space<vmem>>) attributes {dimension_semantics = [#tpu.dimension_semantics<parallel>, #tpu.dimension_semantics<parallel>], iteration_bounds = array<i64: 2, 1>, scalar_prefetch = 0 : i64, scratch_operands = 0 : i64, tpu.core_type = #tpu.core_type<tc>, window_params = [{transform_indices = @transform_0, window_bounds = array<i64: 1, 256, 128>}, {pipeline_mode = #tpu.pipeline_mode<synchronous>, transform_indices = @transform_1, window_bounds = array<i64: 128, 384>}, {pipeline_mode = #tpu.pipeline_mode<synchronous>, transform_indices = @transform_2, window_bounds = array<i64: 1, 384>}, {transform_indices = @transform_3, window_bounds = array<i64: 1, 4, 256, 32>}, {transform_indices = @transform_4, window_bounds = array<i64: 1, 4, 256, 32>}, {transform_indices = @transform_5, window_bounds = array<i64: 1, 4, 256, 32>}]} {
    %c0 = arith.constant 0 : index
    %c0_0 = arith.constant 0 : index
    %c0_1 = arith.constant 0 : index
    %0 = vector.load %arg2[%c0, %c0_0, %c0_1] : memref<1x256x128xf32, #tpu.memory_space<vmem>>, vector<1x256x128xf32>
    %1 = vector.shape_cast %0 : vector<1x256x128xf32> to vector<256x128xf32>
    %2 = arith.truncf %1 : vector<256x128xf32> to vector<256x128xbf16>
    %c0_2 = arith.constant 0 : index
    %c0_3 = arith.constant 0 : index
    %3 = vector.load %arg3[%c0_2, %c0_3] : memref<128x384xbf16, #tpu.memory_space<vmem>>, vector<128x384xbf16>
    %cst = arith.constant dense<0.000000e+00> : vector<256x384xf32>
    %4 = tpu.matmul %2, %3, %cst {dimension_numbers = #tpu.dot_dimension_numbers<[1], [0], [0], [1], [0, 0, 1, 1], [], []>} : vector<256x128xbf16>, vector<128x384xbf16>, vector<256x384xf32> -> vector<256x384xf32>
    %c0_4 = arith.constant 0 : index
    %c0_5 = arith.constant 0 : index
    %5 = vector.load %arg4[%c0_4, %c0_5] : memref<1x384xf32, #tpu.memory_space<vmem>>, vector<1x384xf32>
    %6 = vector.broadcast %5 : vector<1x384xf32> to vector<256x384xf32>
    %7 = arith.addf %4, %6 : vector<256x384xf32>
    %8 = vector.extract_strided_slice %7 {offsets = [0, 0], sizes = [256, 32], strides = [1, 1]} : vector<256x384xf32> to vector<256x32xf32>
    %cst_6 = arith.constant 0.0883883461 : f32
    %9 = vector.broadcast %cst_6 : f32 to vector<256x32xf32>
    %10 = arith.mulf %8, %9 : vector<256x32xf32>
    %11 = arith.truncf %10 : vector<256x32xf32> to vector<256x32xbf16>
    %c0_7 = arith.constant 0 : index
    %c0_8 = arith.constant 0 : index
    %c0_9 = arith.constant 0 : index
    %c0_10 = arith.constant 0 : index
    %12 = vector.load %arg5[%c0_7, %c0_8, %c0_9, %c0_10] : memref<1x4x256x32xbf16, #tpu.memory_space<vmem>>, vector<1x1x256x32xbf16>
    %13 = vector.shape_cast %12 : vector<1x1x256x32xbf16> to vector<256x32xbf16>
    %14 = vector.shape_cast %11 : vector<256x32xbf16> to vector<1x1x256x32xbf16>
    tpu.vector_store %arg5[%c0_7, %c0_8, %c0_9, %c0_10], %14 {strides = array<i32>} : memref<1x4x256x32xbf16, #tpu.memory_space<vmem>>, vector<1x1x256x32xbf16>,
    %15 = vector.extract_strided_slice %7 {offsets = [0, 128], sizes = [256, 32], strides = [1, 1]} : vector<256x384xf32> to vector<256x32xf32>
    %16 = arith.truncf %15 : vector<256x32xf32> to vector<256x32xbf16>
    %c0_11 = arith.constant 0 : index
    %c0_12 = arith.constant 0 : index
    %c0_13 = arith.constant 0 : index
    %c0_14 = arith.constant 0 : index
    %17 = vector.load %arg6[%c0_11, %c0_12, %c0_13, %c0_14] : memref<1x4x256x32xbf16, #tpu.memory_space<vmem>>, vector<1x1x256x32xbf16>
    %18 = vector.shape_cast %17 : vector<1x1x256x32xbf16> to vector<256x32xbf16>
    %19 = vector.shape_cast %16 : vector<256x32xbf16> to vector<1x1x256x32xbf16>
    tpu.vector_store %arg6[%c0_11, %c0_12, %c0_13, %c0_14], %19 {strides = array<i32>} : memref<1x4x256x32xbf16, #tpu.memory_space<vmem>>, vector<1x1x256x32xbf16>,
    %20 = vector.extract_strided_slice %7 {offsets = [0, 256], sizes = [256, 32], strides = [1, 1]} : vector<256x384xf32> to vector<256x32xf32>
    %21 = arith.truncf %20 : vector<256x32xf32> to vector<256x32xbf16>
    %c0_15 = arith.constant 0 : index
    %c0_16 = arith.constant 0 : index
    %c0_17 = arith.constant 0 : index
    %c0_18 = arith.constant 0 : index
    %22 = vector.load %arg7[%c0_15, %c0_16, %c0_17, %c0_18] : memref<1x4x256x32xbf16, #tpu.memory_space<vmem>>, vector<1x1x256x32xbf16>
    %23 = vector.shape_cast %22 : vector<1x1x256x32xbf16> to vector<256x32xbf16>
    %24 = vector.shape_cast %21 : vector<256x32xbf16> to vector<1x1x256x32xbf16>
    tpu.vector_store %arg7[%c0_15, %c0_16, %c0_17, %c0_18], %24 {strides = array<i32>} : memref<1x4x256x32xbf16, #tpu.memory_space<vmem>>, vector<1x1x256x32xbf16>,
    %25 = vector.extract_strided_slice %7 {offsets = [0, 32], sizes = [256, 32], strides = [1, 1]} : vector<256x384xf32> to vector<256x32xf32>
    %cst_19 = arith.constant 0.0883883461 : f32
    %26 = vector.broadcast %cst_19 : f32 to vector<256x32xf32>
    %27 = arith.mulf %25, %26 : vector<256x32xf32>
    %28 = arith.truncf %27 : vector<256x32xf32> to vector<256x32xbf16>
    %c0_20 = arith.constant 0 : index
    %c1 = arith.constant 1 : index
    %c0_21 = arith.constant 0 : index
    %c0_22 = arith.constant 0 : index
    %29 = vector.load %arg5[%c0_20, %c1, %c0_21, %c0_22] : memref<1x4x256x32xbf16, #tpu.memory_space<vmem>>, vector<1x1x256x32xbf16>
    %30 = vector.shape_cast %29 : vector<1x1x256x32xbf16> to vector<256x32xbf16>
    %31 = vector.shape_cast %28 : vector<256x32xbf16> to vector<1x1x256x32xbf16>
    tpu.vector_store %arg5[%c0_20, %c1, %c0_21, %c0_22], %31 {strides = array<i32>} : memref<1x4x256x32xbf16, #tpu.memory_space<vmem>>, vector<1x1x256x32xbf16>,
    %32 = vector.extract_strided_slice %7 {offsets = [0, 160], sizes = [256, 32], strides = [1, 1]} : vector<256x384xf32> to vector<256x32xf32>
    %33 = arith.truncf %32 : vector<256x32xf32> to vector<256x32xbf16>
    %c0_23 = arith.constant 0 : index
    %c1_24 = arith.constant 1 : index
    %c0_25 = arith.constant 0 : index
    %c0_26 = arith.constant 0 : index
    %34 = vector.load %arg6[%c0_23, %c1_24, %c0_25, %c0_26] : memref<1x4x256x32xbf16, #tpu.memory_space<vmem>>, vector<1x1x256x32xbf16>
    %35 = vector.shape_cast %34 : vector<1x1x256x32xbf16> to vector<256x32xbf16>
    %36 = vector.shape_cast %33 : vector<256x32xbf16> to vector<1x1x256x32xbf16>
    tpu.vector_store %arg6[%c0_23, %c1_24, %c0_25, %c0_26], %36 {strides = array<i32>} : memref<1x4x256x32xbf16, #tpu.memory_space<vmem>>, vector<1x1x256x32xbf16>,
    %37 = vector.extract_strided_slice %7 {offsets = [0, 288], sizes = [256, 32], strides = [1, 1]} : vector<256x384xf32> to vector<256x32xf32>
    %38 = arith.truncf %37 : vector<256x32xf32> to vector<256x32xbf16>
    %c0_27 = arith.constant 0 : index
    %c1_28 = arith.constant 1 : index
    %c0_29 = arith.constant 0 : index
    %c0_30 = arith.constant 0 : index
    %39 = vector.load %arg7[%c0_27, %c1_28, %c0_29, %c0_30] : memref<1x4x256x32xbf16, #tpu.memory_space<vmem>>, vector<1x1x256x32xbf16>
    %40 = vector.shape_cast %39 : vector<1x1x256x32xbf16> to vector<256x32xbf16>
    %41 = vector.shape_cast %38 : vector<256x32xbf16> to vector<1x1x256x32xbf16>
    tpu.vector_store %arg7[%c0_27, %c1_28, %c0_29, %c0_30], %41 {strides = array<i32>} : memref<1x4x256x32xbf16, #tpu.memory_space<vmem>>, vector<1x1x256x32xbf16>,
    %42 = vector.extract_strided_slice %7 {offsets = [0, 64], sizes = [256, 32], strides = [1, 1]} : vector<256x384xf32> to vector<256x32xf32>
    %cst_31 = arith.constant 0.0883883461 : f32
    %43 = vector.broadcast %cst_31 : f32 to vector<256x32xf32>
    %44 = arith.mulf %42, %43 : vector<256x32xf32>
    %45 = arith.truncf %44 : vector<256x32xf32> to vector<256x32xbf16>
    %c0_32 = arith.constant 0 : index
    %c2 = arith.constant 2 : index
    %c0_33 = arith.constant 0 : index
    %c0_34 = arith.constant 0 : index
    %46 = vector.load %arg5[%c0_32, %c2, %c0_33, %c0_34] : memref<1x4x256x32xbf16, #tpu.memory_space<vmem>>, vector<1x1x256x32xbf16>
    %47 = vector.shape_cast %46 : vector<1x1x256x32xbf16> to vector<256x32xbf16>
    %48 = vector.shape_cast %45 : vector<256x32xbf16> to vector<1x1x256x32xbf16>
    tpu.vector_store %arg5[%c0_32, %c2, %c0_33, %c0_34], %48 {strides = array<i32>} : memref<1x4x256x32xbf16, #tpu.memory_space<vmem>>, vector<1x1x256x32xbf16>,
    %49 = vector.extract_strided_slice %7 {offsets = [0, 192], sizes = [256, 32], strides = [1, 1]} : vector<256x384xf32> to vector<256x32xf32>
    %50 = arith.truncf %49 : vector<256x32xf32> to vector<256x32xbf16>
    %c0_35 = arith.constant 0 : index
    %c2_36 = arith.constant 2 : index
    %c0_37 = arith.constant 0 : index
    %c0_38 = arith.constant 0 : index
    %51 = vector.load %arg6[%c0_35, %c2_36, %c0_37, %c0_38] : memref<1x4x256x32xbf16, #tpu.memory_space<vmem>>, vector<1x1x256x32xbf16>
    %52 = vector.shape_cast %51 : vector<1x1x256x32xbf16> to vector<256x32xbf16>
    %53 = vector.shape_cast %50 : vector<256x32xbf16> to vector<1x1x256x32xbf16>
    tpu.vector_store %arg6[%c0_35, %c2_36, %c0_37, %c0_38], %53 {strides = array<i32>} : memref<1x4x256x32xbf16, #tpu.memory_space<vmem>>, vector<1x1x256x32xbf16>,
    %54 = vector.extract_strided_slice %7 {offsets = [0, 320], sizes = [256, 32], strides = [1, 1]} : vector<256x384xf32> to vector<256x32xf32>
    %55 = arith.truncf %54 : vector<256x32xf32> to vector<256x32xbf16>
    %c0_39 = arith.constant 0 : index
    %c2_40 = arith.constant 2 : index
    %c0_41 = arith.constant 0 : index
    %c0_42 = arith.constant 0 : index
    %56 = vector.load %arg7[%c0_39, %c2_40, %c0_41, %c0_42] : memref<1x4x256x32xbf16, #tpu.memory_space<vmem>>, vector<1x1x256x32xbf16>
    %57 = vector.shape_cast %56 : vector<1x1x256x32xbf16> to vector<256x32xbf16>
    %58 = vector.shape_cast %55 : vector<256x32xbf16> to vector<1x1x256x32xbf16>
    tpu.vector_store %arg7[%c0_39, %c2_40, %c0_41, %c0_42], %58 {strides = array<i32>} : memref<1x4x256x32xbf16, #tpu.memory_space<vmem>>, vector<1x1x256x32xbf16>,
    %59 = vector.extract_strided_slice %7 {offsets = [0, 96], sizes = [256, 32], strides = [1, 1]} : vector<256x384xf32> to vector<256x32xf32>
    %cst_43 = arith.constant 0.0883883461 : f32
    %60 = vector.broadcast %cst_43 : f32 to vector<256x32xf32>
    %61 = arith.mulf %59, %60 : vector<256x32xf32>
    %62 = arith.truncf %61 : vector<256x32xf32> to vector<256x32xbf16>
    %c0_44 = arith.constant 0 : index
    %c3 = arith.constant 3 : index
    %c0_45 = arith.constant 0 : index
    %c0_46 = arith.constant 0 : index
    %63 = vector.load %arg5[%c0_44, %c3, %c0_45, %c0_46] : memref<1x4x256x32xbf16, #tpu.memory_space<vmem>>, vector<1x1x256x32xbf16>
    %64 = vector.shape_cast %63 : vector<1x1x256x32xbf16> to vector<256x32xbf16>
    %65 = vector.shape_cast %62 : vector<256x32xbf16> to vector<1x1x256x32xbf16>
    tpu.vector_store %arg5[%c0_44, %c3, %c0_45, %c0_46], %65 {strides = array<i32>} : memref<1x4x256x32xbf16, #tpu.memory_space<vmem>>, vector<1x1x256x32xbf16>,
    %66 = vector.extract_strided_slice %7 {offsets = [0, 224], sizes = [256, 32], strides = [1, 1]} : vector<256x384xf32> to vector<256x32xf32>
    %67 = arith.truncf %66 : vector<256x32xf32> to vector<256x32xbf16>
    %c0_47 = arith.constant 0 : index
    %c3_48 = arith.constant 3 : index
    %c0_49 = arith.constant 0 : index
    %c0_50 = arith.constant 0 : index
    %68 = vector.load %arg6[%c0_47, %c3_48, %c0_49, %c0_50] : memref<1x4x256x32xbf16, #tpu.memory_space<vmem>>, vector<1x1x256x32xbf16>
    %69 = vector.shape_cast %68 : vector<1x1x256x32xbf16> to vector<256x32xbf16>
    %70 = vector.shape_cast %67 : vector<256x32xbf16> to vector<1x1x256x32xbf16>
    tpu.vector_store %arg6[%c0_47, %c3_48, %c0_49, %c0_50], %70 {strides = array<i32>} : memref<1x4x256x32xbf16, #tpu.memory_space<vmem>>, vector<1x1x256x32xbf16>,
    %71 = vector.extract_strided_slice %7 {offsets = [0, 352], sizes = [256, 32], strides = [1, 1]} : vector<256x384xf32> to vector<256x32xf32>
    %72 = arith.truncf %71 : vector<256x32xf32> to vector<256x32xbf16>
    %c0_51 = arith.constant 0 : index
    %c3_52 = arith.constant 3 : index
    %c0_53 = arith.constant 0 : index
    %c0_54 = arith.constant 0 : index
    %73 = vector.load %arg7[%c0_51, %c3_52, %c0_53, %c0_54] : memref<1x4x256x32xbf16, #tpu.memory_space<vmem>>, vector<1x1x256x32xbf16>
    %74 = vector.shape_cast %73 : vector<1x1x256x32xbf16> to vector<256x32xbf16>
    %75 = vector.shape_cast %72 : vector<256x32xbf16> to vector<1x1x256x32xbf16>
    tpu.vector_store %arg7[%c0_51, %c3_52, %c0_53, %c0_54], %75 {strides = array<i32>} : memref<1x4x256x32xbf16, #tpu.memory_space<vmem>>, vector<1x1x256x32xbf16>,
    return
  }
  func.func @transform_0(%arg0: i32, %arg1: i32) -> (i32, i32, i32) {
    %c0_i32 = arith.constant 0 : i32
    %c0_i32_0 = arith.constant 0 : i32
    return %arg0, %arg1, %c0_i32 : i32, i32, i32
  }
  func.func @transform_1(%arg0: i32, %arg1: i32) -> (i32, i32) {
    %c0_i32 = arith.constant 0 : i32
    %c0_i32_0 = arith.constant 0 : i32
    %c0_i32_1 = arith.constant 0 : i32
    return %c0_i32, %c0_i32_0 : i32, i32
  }
  func.func @transform_2(%arg0: i32, %arg1: i32) -> (i32, i32) {
    %c0_i32 = arith.constant 0 : i32
    %c0_i32_0 = arith.constant 0 : i32
    %c0_i32_1 = arith.constant 0 : i32
    return %c0_i32, %c0_i32_0 : i32, i32
  }
  func.func @transform_3(%arg0: i32, %arg1: i32) -> (i32, i32, i32, i32) {
    %c0_i32 = arith.constant 0 : i32
    %c0_i32_0 = arith.constant 0 : i32
    %c0_i32_1 = arith.constant 0 : i32
    return %arg0, %c0_i32, %arg1, %c0_i32_0 : i32, i32, i32, i32
  }
  func.func @transform_4(%arg0: i32, %arg1: i32) -> (i32, i32, i32, i32) {
    %c0_i32 = arith.constant 0 : i32
    %c0_i32_0 = arith.constant 0 : i32
    %c0_i32_1 = arith.constant 0 : i32
    return %arg0, %c0_i32, %arg1, %c0_i32_0 : i32, i32, i32, i32
  }
  func.func @transform_5(%arg0: i32, %arg1: i32) -> (i32, i32, i32, i32) {
    %c0_i32 = arith.constant 0 : i32
    %c0_i32_0 = arith.constant 0 : i32
    %c0_i32_1 = arith.constant 0 : i32
    return %arg0, %c0_i32, %arg1, %c0_i32_0 : i32, i32, i32, i32
  }
}

</mosaic_0001>

<llo_original>
// kernel: tpu_custom_call.1
$region0: #{tpu_custom_call.1}
  #allocation0 [shape = 'u32[]', space=smem, size = 0x4, offset = 0x4, fixed_abs, tag = 'smem constant byte address 0x4 - core index']
  #allocation1 [shape = 'u32[72,128]{1,0:T(1,128)}', space=vmem, size = 0x9000, scoped, tag = 'internal scratch']
  %s0 = inlined_call_operand.hbm [shape: f32[2,256,128], index: 0, kind: input, shape index: {}]
  %s1 = inlined_call_operand.hbm [shape: bf16[128,384], index: 1, kind: input, shape index: {}]
  %s2 = inlined_call_operand.hbm [shape: f32[1,384], index: 2, kind: input, shape index: {}]
  %s3 = inlined_call_operand.vmem [shape: bf16[2,4,256,32], index: 3, kind: output, shape index: {0}]
  %s4 = inlined_call_operand.vmem [shape: bf16[2,4,256,32], index: 4, kind: output, shape index: {1}]
  %s5 = inlined_call_operand.vmem [shape: bf16[2,4,256,32], index: 5, kind: output, shape index: {2}]
  %6 = xla_tuple %s3, %s4, %s5
  %s7 = sld [smem:[#allocation0]]
  $region73: #{tpu_custom_call.1} parent=0
    _
  %s9 = ssub.s32 1, %s7
  %s10 = scalar_select 0, %s9, %s7
  $region1: #{tpu_custom_call.1} parent=0
    #allocation2 [shape = 'u8[262144]{0}', space=vmem, size = 0x40000, scoped, tag = 'input window, operand 0']
    #allocation3 [shape = 's32[2]{0}', space=sflag, size = 0x8, scoped, tag = 'scoped memory for tpu_custom_call.1']
    #allocation4 [shape = 'u8[98304]{0}', space=vmem, size = 0x18000, scoped, tag = 'input window, operand 1, single buffered']
    #allocation5 [shape = 's32[1]{0}', space=sflag, size = 0x4, scoped, tag = 'scoped memory for tpu_custom_call.1']
    #allocation6 [shape = 'u8[1536]{0}', space=vmem, size = 0x800, scoped, tag = 'input window, operand 2, single buffered']
    %11 = vsyncpa [#allocation3], 0
    %s12 = scalar_lea.sflag [#allocation3], 1
    %13 = vsyncpa %s12, 0
    %14 = vsyncpa [#allocation5], 0
    loop: start=0, step=1, limit=4
    $region2: #{tpu_custom_call.1} parent=1 // loop_pre_header
      _
    $region3: #{tpu_custom_call.1} parent=1 // loop_header
      %s16 = sphi 0, %s20
      %p17 = scmp.ge.s32.totalorder %s16, 4
      %s23 = sphi 0, %s35
      %s24 = sphi 0, %s31
      %s25 = sphi 0, %s23
      %s26 = sphi 0, %s24
      %s27 = sphi 0, %s25
      %s28 = sphi 0, %s26
      %s40 = sphi 0, %s42
      %s43 = sphi 0, %s40
      %s44 = sphi 0, %s43
      %s60 = sphi 0, %s44
      %s64 = sphi 0, %s64
      %s66 = sphi 0, %s64
      %s67 = sphi 0, %s66
      %s81 = sphi 0, %s67
      %s85 = sphi 0, %s85
      %s87 = sphi 0, %s85
      %s88 = sphi 0, %s87
      %s102 = sphi 0, %s88
      %s110 = sphi 0, %s112
      %s113 = sphi 0, %s110
      %s114 = sphi 0, %s113
      %s130 = sphi 0, %s114
      %s138 = sphi 0, %s140
      %s141 = sphi 0, %s138
      %s142 = sphi 0, %s141
      %s158 = sphi 0, %s142
      %s166 = sphi 0, %s168
      %s169 = sphi 0, %s166
      %s170 = sphi 0, %s169
      %s186 = sphi 0, %s170
    $region4: #{tpu_custom_call.1} parent=1 // loop_header_branch
      %19 = sbr.rel (%p17) target = $region8
    $region5: #{tpu_custom_call.1} parent=1 // loop_body
      %s21 = ssub.s32 %s16, 1
      %s22 = ssub.s32 %s16, 2
      %s29 = sadd.s32 1, %s24
      %p30 = scmp.ge.s32.totalorder %s29, 1
      %s31 = scalar_select %p30, 0, %s29
      %s32 = sadd.s32 1, %s23
      %s33 = scalar_select %p30, %s32, %s23
      %p34 = scmp.ge.s32.totalorder %s33, 2
      %s35 = scalar_select %p34, 0, %s33
      %s36 = ssub.s32 %s23, %s35
      %s37 = ssub.s32 %s24, %s31
      %s38 = sor.u32 %s36, %s37
      %p39 = scmp.eq.s32.totalorder %s38, 0
      %s41 = sadd.s32 %s40, 1
      %s42 = scalar_select %p39, %s40, %s41
      %p45 = pneg %p39
      %p46 = scmp.eq.s32.totalorder %s16, 1
      %p47 = por %p45, %p46
      %p48 = scmp.ne.s32.totalorder %s40, %s43
      %p49 = scmp.eq.s32.totalorder %s16, 0
      %p50 = por %p48, %p49
      %p51 = scmp.ne.s32.totalorder %s40, %s43
      %p52 = scmp.eq.s32.totalorder %s21, 1
      %p53 = por %p51, %p52
      %p54 = scmp.ne.s32.totalorder %s43, %s44
      %p55 = scmp.eq.s32.totalorder %s21, 0
      %p56 = por %p54, %p55
      %p57 = scmp.ne.s32.totalorder %s43, %s44
      %p58 = scmp.eq.s32.totalorder %s22, 1
      %p59 = por %p57, %p58
      %p61 = scmp.ne.s32.totalorder %s44, %s60
      %p62 = scmp.eq.s32.totalorder %s22, 0
      %p63 = por %p61, %p62
      %s65 = sadd.s32 %s64, 1
      %p68 = scmp.eq.s32.totalorder %s16, 1
      %p69 = scmp.ne.s32.totalorder %s64, %s66
      %p70 = scmp.eq.s32.totalorder %s16, 0
      %p71 = por %p69, %p70
      %p72 = scmp.ne.s32.totalorder %s64, %s66
      %p73 = scmp.eq.s32.totalorder %s21, 1
      %p74 = por %p72, %p73
      %p75 = scmp.ne.s32.totalorder %s66, %s67
      %p76 = scmp.eq.s32.totalorder %s21, 0
      %p77 = por %p75, %p76
      %p78 = scmp.ne.s32.totalorder %s66, %s67
      %p79 = scmp.eq.s32.totalorder %s22, 1
      %p80 = por %p78, %p79
      %p82 = scmp.ne.s32.totalorder %s67, %s81
      %p83 = scmp.eq.s32.totalorder %s22, 0
      %p84 = por %p82, %p83
      %s86 = sadd.s32 %s85, 1
      %p89 = scmp.eq.s32.totalorder %s16, 1
      %p90 = scmp.ne.s32.totalorder %s85, %s87
      %p91 = scmp.eq.s32.totalorder %s16, 0
      %p92 = por %p90, %p91
      %p93 = scmp.ne.s32.totalorder %s85, %s87
      %p94 = scmp.eq.s32.totalorder %s21, 1
      %p95 = por %p93, %p94
      %p96 = scmp.ne.s32.totalorder %s87, %s88
      %p97 = scmp.eq.s32.totalorder %s21, 0
      %p98 = por %p96, %p97
      %p99 = scmp.ne.s32.totalorder %s87, %s88
      %p100 = scmp.eq.s32.totalorder %s22, 1
      %p101 = por %p99, %p100
      %p103 = scmp.ne.s32.totalorder %s88, %s102
      %p104 = scmp.eq.s32.totalorder %s22, 0
      %p105 = por %p103, %p104
      %s106 = ssub.s32 %s23, %s35
      %s107 = ssub.s32 %s24, %s31
      %s108 = sor.u32 %s106, %s107
      %p109 = scmp.eq.s32.totalorder %s108, 0
      %s111 = sadd.s32 %s110, 1
      %s112 = scalar_select %p109, %s110, %s111
      %p115 = pneg %p109
      %p116 = scmp.eq.s32.totalorder %s16, 1
      %p117 = por %p115, %p116
      %p118 = scmp.ne.s32.totalorder %s110, %s113
      %p119 = scmp.eq.s32.totalorder %s16, 0
      %p120 = por %p118, %p119
      %p121 = scmp.ne.s32.totalorder %s110, %s113
      %p122 = scmp.eq.s32.totalorder %s21, 1
      %p123 = por %p121, %p122
      %p124 = scmp.ne.s32.totalorder %s113, %s114
      %p125 = scmp.eq.s32.totalorder %s21, 0
      %p126 = por %p124, %p125
      %p127 = scmp.ne.s32.totalorder %s113, %s114
      %p128 = scmp.eq.s32.totalorder %s22, 1
      %p129 = por %p127, %p128
      %p131 = scmp.ne.s32.totalorder %s114, %s130
      %p132 = scmp.eq.s32.totalorder %s22, 0
      %p133 = por %p131, %p132
      %s134 = ssub.s32 %s23, %s35
      %s135 = ssub.s32 %s24, %s31
      %s136 = sor.u32 %s134, %s135
      %p137 = scmp.eq.s32.totalorder %s136, 0
      %s139 = sadd.s32 %s138, 1
      %s140 = scalar_select %p137, %s138, %s139
      %p143 = pneg %p137
      %p144 = scmp.eq.s32.totalorder %s16, 1
      %p145 = por %p143, %p144
      %p146 = scmp.ne.s32.totalorder %s138, %s141
      %p147 = scmp.eq.s32.totalorder %s16, 0
      %p148 = por %p146, %p147
      %p149 = scmp.ne.s32.totalorder %s138, %s141
      %p150 = scmp.eq.s32.totalorder %s21, 1
      %p151 = por %p149, %p150
      %p152 = scmp.ne.s32.totalorder %s141, %s142
      %p153 = scmp.eq.s32.totalorder %s21, 0
      %p154 = por %p152, %p153
      %p155 = scmp.ne.s32.totalorder %s141, %s142
      %p156 = scmp.eq.s32.totalorder %s22, 1
      %p157 = por %p155, %p156
      %p159 = scmp.ne.s32.totalorder %s142, %s158
      %p160 = scmp.eq.s32.totalorder %s22, 0
      %p161 = por %p159, %p160
      %s162 = ssub.s32 %s23, %s35
      %s163 = ssub.s32 %s24, %s31
      %s164 = sor.u32 %s162, %s163
      %p165 = scmp.eq.s32.totalorder %s164, 0
      %s167 = sadd.s32 %s166, 1
      %s168 = scalar_select %p165, %s166, %s167
      %p171 = pneg %p165
      %p172 = scmp.eq.s32.totalorder %s16, 1
      %p173 = por %p171, %p172
      %p174 = scmp.ne.s32.totalorder %s166, %s169
      %p175 = scmp.eq.s32.totalorder %s16, 0
      %p176 = por %p174, %p175
      %p177 = scmp.ne.s32.totalorder %s166, %s169
      %p178 = scmp.eq.s32.totalorder %s21, 1
      %p179 = por %p177, %p178
      %p180 = scmp.ne.s32.totalorder %s169, %s170
      %p181 = scmp.eq.s32.totalorder %s21, 0
      %p182 = por %p180, %p181
      %p183 = scmp.ne.s32.totalorder %s169, %s170
      %p184 = scmp.eq.s32.totalorder %s22, 1
      %p185 = por %p183, %p184
      %p187 = scmp.ne.s32.totalorder %s170, %s186
      %p188 = scmp.eq.s32.totalorder %s22, 0
      %p189 = por %p187, %p188
      %p190 = scmp.le.s32.totalorder 1, %s16
      %p191 = scmp.lt.s32.totalorder %s16, 3
      %p192 = pnand %p190, %p191
      %p193 = pneg %p192
      // Predicated region
      $region9: #{tpu_custom_call.1} parent=5 // pred_check
        _
      $region10: #{tpu_custom_call.1} parent=5 // pred_check_branch
        %195 = sbr.rel (%p192) target = $region12
      $region11: #{tpu_custom_call.1} parent=5 // pred_region
        %s196 = ssub.s32 %s16, 1
        // Predicated region
        $region13: #{tpu_custom_call.1} parent=11 // pred_check
          %p197 = pneg %p77
        $region14: #{tpu_custom_call.1} parent=11 // pred_check_branch
          %199 = sbr.rel (%p197) target = $region16
        $region15: #{tpu_custom_call.1} parent=11 // pred_region
          %201 = vsyncadd [#allocation5], 0
          %s202 = sshll.u32 %s1, 4
          %s203 = int_to_ptr.hbm [resolvable:$true] %s202
          %s204 = sshll.u32 [#allocation4], 4
          %s205 = int_to_ptr.vmem [resolvable:$true] %s204
          %210 = dma.hbm_to_vmem [thread:$0]  %s203, 3072, %s205, [#allocation5], 192, 192, 12
        $region16: #{tpu_custom_call.1} parent=11 // pred_fallthru
          _
        // Predicated region
        $region17: #{tpu_custom_call.1} parent=11 // pred_check
          %p211 = pneg %p98
        $region18: #{tpu_custom_call.1} parent=11 // pred_check_branch
          %213 = sbr.rel (%p211) target = $region20
        $region19: #{tpu_custom_call.1} parent=11 // pred_region
          %215 = vsyncadd [#allocation5], 0
          %s217 = sshll.u32 %s2, 4
          %s218 = int_to_ptr.hbm [resolvable:$true] %s217
          %s219 = sshll.u32 [#allocation6], 4
          %s220 = int_to_ptr.vmem [resolvable:$true] %s219
          %222 = dma.hbm_to_vmem [thread:$0]  %s218, 48, %s220, [#allocation5]
        $region20: #{tpu_custom_call.1} parent=11 // pred_fallthru
          _
      $region12: #{tpu_custom_call.1} parent=5 // pred_fallthru
        _
      %p223 = scmp.lt.s32.totalorder %s16, 2
      // Predicated region
      $region21: #{tpu_custom_call.1} parent=5 // pred_check
        %p224 = pneg %p223
      $region22: #{tpu_custom_call.1} parent=5 // pred_check_branch
        %226 = sbr.rel (%p224) target = $region24
      $region23: #{tpu_custom_call.1} parent=5 // pred_region
        // Predicated region
        $region25: #{tpu_custom_call.1} parent=23 // pred_check
          %p227 = pneg %p50
        $region26: #{tpu_custom_call.1} parent=23 // pred_check_branch
          %229 = sbr.rel (%p227) target = $region28
        $region27: #{tpu_custom_call.1} parent=23 // pred_region
          %s230 = sand.u32 %s40, 1
          %s231 = scalar_lea.sflag [#allocation3], %s230
          %s232 = sand.u32 %s40, 1
          %s233 = smul.addr %s232, 256
          %s234 = scalar_lea.vmem [#allocation2], %s233
          %s235 = smul.u32 32, %s24
          %237 = vsyncadd %s231, 0
          %s238 = smul.addr %s23, 32
          %s239 = sadd.s32 %s235, %s238
          %s240 = smul.addr %s239, 8
          %s241 = scalar_lea.hbm %s0, %s240
          %s242 = sshll.u32 %s241, 4
          %s243 = int_to_ptr.hbm [resolvable:$true] %s242
          %s244 = sshll.u32 %s234, 4
          %s245 = int_to_ptr.vmem [resolvable:$true] %s244
          %250 = dma.hbm_to_vmem [thread:$0]  %s243, 4096, %s245, %s231, 128, 128, 8
        $region28: #{tpu_custom_call.1} parent=23 // pred_fallthru
          _
      $region24: #{tpu_custom_call.1} parent=5 // pred_fallthru
        _
      %p251 = scmp.le.s32.totalorder 1, %s16
      %p252 = scmp.lt.s32.totalorder %s16, 3
      %p253 = pnand %p251, %p252
      %p254 = pneg %p253
      // Predicated region
      $region29: #{tpu_custom_call.1} parent=5 // pred_check
        _
      $region30: #{tpu_custom_call.1} parent=5 // pred_check_branch
        %256 = sbr.rel (%p253) target = $region32
      $region31: #{tpu_custom_call.1} parent=5 // pred_region
        %s257 = ssub.s32 %s16, 1
        %s258 = sand.u32 %s43, 1
        %s259 = scalar_lea.sflag [#allocation3], %s258
        %s260 = sand.u32 %s43, 1
        %s261 = smul.addr %s260, 256
        %s262 = scalar_lea.vmem [#allocation2], %s261
        // Predicated region
        $region33: #{tpu_custom_call.1} parent=31 // pred_check
          %p263 = pneg %p56
        $region34: #{tpu_custom_call.1} parent=31 // pred_check_branch
          %265 = sbr.rel (%p263) target = $region36
        $region35: #{tpu_custom_call.1} parent=31 // pred_region
          %267 = dma.done %s259, 4096
        $region36: #{tpu_custom_call.1} parent=31 // pred_fallthru
          _
        // Predicated region
        $region37: #{tpu_custom_call.1} parent=31 // pred_check
          %p268 = pneg %p77
        $region38: #{tpu_custom_call.1} parent=31 // pred_check_branch
          %270 = sbr.rel (%p268) target = $region40
        $region39: #{tpu_custom_call.1} parent=31 // pred_region
          %272 = dma.done [#allocation5], 3072
        $region40: #{tpu_custom_call.1} parent=31 // pred_fallthru
          _
        // Predicated region
        $region41: #{tpu_custom_call.1} parent=31 // pred_check
          %p273 = pneg %p98
        $region42: #{tpu_custom_call.1} parent=31 // pred_check_branch
          %275 = sbr.rel (%p273) target = $region44
        $region43: #{tpu_custom_call.1} parent=31 // pred_region
          %277 = dma.done [#allocation5], 48
        $region44: #{tpu_custom_call.1} parent=31 // pred_fallthru
          _
        %s278 = sand.u32 %s43, 1
        %s279 = scalar_lea.sflag [#allocation3], %s278
        %s280 = sand.u32 %s43, 1
        %s281 = smul.addr %s280, 256
        %s282 = scalar_lea.vmem [#allocation2], %s281
        %p283 = pneg %p56
        %p284 = pneg %p53
        %p285 = pneg %p77
        %p286 = pneg %p74
        %p287 = pneg %p98
        %p288 = pneg %p95
        %p289 = pneg %p126
        %p290 = pneg %p123
        %s291 = smul.u32 32, %s26
        %p292 = scmp.lt.s32.totalorder %s25, 1
        %s293 = scalar_select %p292, %s25, 1
        %p294 = scmp.lt.s32.totalorder %s291, 31
        %s295 = scalar_select %p294, %s291, 31
        %s296 = smul.addr %s293, 128
        %s297 = sadd.s32 %s295, %s296
        %s298 = smul.addr %s297, 4
        %s299 = scalar_lea.vmem %s3, %s298
        %p300 = pneg %p154
        %p301 = pneg %p151
        %s302 = smul.u32 32, %s26
        %p303 = scmp.lt.s32.totalorder %s25, 1
        %s304 = scalar_select %p303, %s25, 1
        %p305 = scmp.lt.s32.totalorder %s302, 31
        %s306 = scalar_select %p305, %s302, 31
        %s307 = smul.addr %s304, 128
        %s308 = sadd.s32 %s306, %s307
        %s309 = smul.addr %s308, 4
        %s310 = scalar_lea.vmem %s4, %s309
        %p311 = pneg %p182
        %p312 = pneg %p179
        %s313 = smul.u32 32, %s26
        %p314 = scmp.lt.s32.totalorder %s25, 1
        %s315 = scalar_select %p314, %s25, 1
        %p316 = scmp.lt.s32.totalorder %s313, 31
        %s317 = scalar_select %p316, %s313, 31
        %s318 = smul.addr %s315, 128
        %s319 = sadd.s32 %s317, %s318
        %s320 = smul.addr %s319, 4
        %s321 = scalar_lea.vmem %s5, %s320
        %s322 = smul.u32 32, %s26
        %s323 = smul.u32 32, %s26
        %p324 = scmp.lt.s32.totalorder %s25, 1
        %s325 = scalar_select %p324, %s25, 1
        %p326 = scmp.lt.s32.totalorder %s323, 31
        %s327 = scalar_select %p326, %s323, 31
        %s328 = smul.addr %s325, 128
        %s329 = sadd.s32 %s327, %s328
        %s330 = smul.addr %s329, 4
        %s331 = scalar_lea.vmem %s3, %s330
        %s332 = smul.u32 32, %s26
        %s333 = smul.u32 32, %s26
        %p334 = scmp.lt.s32.totalorder %s25, 1
        %s335 = scalar_select %p334, %s25, 1
        %p336 = scmp.lt.s32.totalorder %s333, 31
        %s337 = scalar_select %p336, %s333, 31
        %s338 = smul.addr %s335, 128
        %s339 = sadd.s32 %s337, %s338
        %s340 = smul.addr %s339, 4
        %s341 = scalar_lea.vmem %s4, %s340
        %s342 = smul.u32 32, %s26
        %s343 = smul.u32 32, %s26
        %p344 = scmp.lt.s32.totalorder %s25, 1
        %s345 = scalar_select %p344, %s25, 1
        %p346 = scmp.lt.s32.totalorder %s343, 31
        %s347 = scalar_select %p346, %s343, 31
        %s348 = smul.addr %s345, 128
        %s349 = sadd.s32 %s347, %s348
        %s350 = smul.addr %s349, 4
        %s351 = scalar_lea.vmem %s5, %s350
        %s352 = smul.u32 32, %s26
        %v353 = vld [vmem:[%s262] sm:$0xff]
        %v354 = vld [vmem:[%s262 + $0x8] sm:$0xff]
        %v355 = vld [vmem:[%s262 + $0x10] sm:$0xff]
        %v356 = vld [vmem:[%s262 + $0x18] sm:$0xff]
        %v357 = vld [vmem:[%s262 + $0x20] sm:$0xff]
        %v358 = vld [vmem:[%s262 + $0x28] sm:$0xff]
        %v359 = vld [vmem:[%s262 + $0x30] sm:$0xff]
        %v360 = vld [vmem:[%s262 + $0x38] sm:$0xff]
        %v361 = vld [vmem:[%s262 + $0x40] sm:$0xff]
        %v362 = vld [vmem:[%s262 + $0x48] sm:$0xff]
        %v363 = vld [vmem:[%s262 + $0x50] sm:$0xff]
        %v364 = vld [vmem:[%s262 + $0x58] sm:$0xff]
        %v365 = vld [vmem:[%s262 + $0x60] sm:$0xff]
        %v366 = vld [vmem:[%s262 + $0x68] sm:$0xff]
        %v367 = vld [vmem:[%s262 + $0x70] sm:$0xff]
        %v368 = vld [vmem:[%s262 + $0x78] sm:$0xff]
        %v369 = vld [vmem:[%s262 + $0x80] sm:$0xff]
        %v370 = vld [vmem:[%s262 + $0x88] sm:$0xff]
        %v371 = vld [vmem:[%s262 + $0x90] sm:$0xff]
        %v372 = vld [vmem:[%s262 + $0x98] sm:$0xff]
        %v373 = vld [vmem:[%s262 + $0xa0] sm:$0xff]
        %v374 = vld [vmem:[%s262 + $0xa8] sm:$0xff]
        %v375 = vld [vmem:[%s262 + $0xb0] sm:$0xff]
        %v376 = vld [vmem:[%s262 + $0xb8] sm:$0xff]
        %v377 = vld [vmem:[%s262 + $0xc0] sm:$0xff]
        %v378 = vld [vmem:[%s262 + $0xc8] sm:$0xff]
        %v379 = vld [vmem:[%s262 + $0xd0] sm:$0xff]
        %v380 = vld [vmem:[%s262 + $0xd8] sm:$0xff]
        %v381 = vld [vmem:[%s262 + $0xe0] sm:$0xff]
        %v382 = vld [vmem:[%s262 + $0xe8] sm:$0xff]
        %v383 = vld [vmem:[%s262 + $0xf0] sm:$0xff]
        %v384 = vld [vmem:[%s262 + $0xf8] sm:$0xff]
        %v385 = vpack.c.bf16 %v354, %v353
        %v386 = vpack.c.bf16 %v356, %v355
        %v387 = vpack.c.bf16 %v358, %v357
        %v388 = vpack.c.bf16 %v360, %v359
        %v389 = vpack.c.bf16 %v362, %v361
        %v390 = vpack.c.bf16 %v364, %v363
        %v391 = vpack.c.bf16 %v366, %v365
        %v392 = vpack.c.bf16 %v368, %v367
        %v393 = vpack.c.bf16 %v370, %v369
        %v394 = vpack.c.bf16 %v372, %v371
        %v395 = vpack.c.bf16 %v374, %v373
        %v396 = vpack.c.bf16 %v376, %v375
        %v397 = vpack.c.bf16 %v378, %v377
        %v398 = vpack.c.bf16 %v380, %v379
        %v399 = vpack.c.bf16 %v382, %v381
        %v400 = vpack.c.bf16 %v384, %v383
        %v401 = vld [vmem:[#allocation4] sm:$0xff]
        %v402 = vld [vmem:[#allocation4 + $0x8] sm:$0xf]
        %v403 = vld [vmem:[#allocation4 + $0xc] sm:$0xff]
        %v404 = vld [vmem:[#allocation4 + $0x14] sm:$0xf]
        %v405 = vld [vmem:[#allocation4 + $0x18] sm:$0xff]
        %v406 = vld [vmem:[#allocation4 + $0x20] sm:$0xf]
        %v407 = vld [vmem:[#allocation4 + $0x24] sm:$0xff]
        %v408 = vld [vmem:[#allocation4 + $0x2c] sm:$0xf]
        %v409 = vld [vmem:[#allocation4 + $0x30] sm:$0xff]
        %v410 = vld [vmem:[#allocation4 + $0x38] sm:$0xf]
        %v411 = vld [vmem:[#allocation4 + $0x3c] sm:$0xff]
        %v412 = vld [vmem:[#allocation4 + $0x44] sm:$0xf]
        %v413 = vld [vmem:[#allocation4 + $0x48] sm:$0xff]
        %v414 = vld [vmem:[#allocation4 + $0x50] sm:$0xf]
        %v415 = vld [vmem:[#allocation4 + $0x54] sm:$0xff]
        %v416 = vld [vmem:[#allocation4 + $0x5c] sm:$0xf]
        %v417 = vld [vmem:[#allocation4 + $0x60] sm:$0xff]
        %v418 = vld [vmem:[#allocation4 + $0x68] sm:$0xf]
        %v419 = vld [vmem:[#allocation4 + $0x6c] sm:$0xff]
        %v420 = vld [vmem:[#allocation4 + $0x74] sm:$0xf]
        %v421 = vld [vmem:[#allocation4 + $0x78] sm:$0xff]
        %v422 = vld [vmem:[#allocation4 + $0x80] sm:$0xf]
        %v423 = vld [vmem:[#allocation4 + $0x84] sm:$0xff]
        %v424 = vld [vmem:[#allocation4 + $0x8c] sm:$0xf]
        %v425 = vld [vmem:[#allocation4 + $0x90] sm:$0xff]
        %v426 = vld [vmem:[#allocation4 + $0x98] sm:$0xf]
        %v427 = vld [vmem:[#allocation4 + $0x9c] sm:$0xff]
        %v428 = vld [vmem:[#allocation4 + $0xa4] sm:$0xf]
        %v429 = vld [vmem:[#allocation4 + $0xa8] sm:$0xff]
        %v430 = vld [vmem:[#allocation4 + $0xb0] sm:$0xf]
        %v431 = vld [vmem:[#allocation4 + $0xb4] sm:$0xff]
        %v432 = vld [vmem:[#allocation4 + $0xbc] sm:$0xf]
        %v433 = vld [vmem:[#allocation6] sm:$0x7]
        %v435 = vperm.slane %v433, 0
        %v436 = vperm.slane %v433, 1
        %v437 = vperm.slane %v433, 2
        %v473 = vunpack.c.l.b16 %v401
        %v474 = vunpack.c.h.b16 %v401
        %v475 = vunpack.c.l.b16 %v402
        %v476 = vunpack.c.l.b16 %v403
        %v477 = vunpack.c.h.b16 %v403
        %v478 = vunpack.c.l.b16 %v404
        %v479 = vunpack.c.l.b16 %v405
        %v480 = vunpack.c.h.b16 %v405
        %v481 = vunpack.c.l.b16 %v406
        %v482 = vunpack.c.l.b16 %v407
        %v483 = vunpack.c.h.b16 %v407
        %v484 = vunpack.c.l.b16 %v408
        %v485 = vunpack.c.l.b16 %v409
        %v486 = vunpack.c.h.b16 %v409
        %v487 = vunpack.c.l.b16 %v410
        %v488 = vunpack.c.l.b16 %v411
        %v489 = vunpack.c.h.b16 %v411
        %v490 = vunpack.c.l.b16 %v412
        %v491 = vunpack.c.l.b16 %v413
        %v492 = vunpack.c.h.b16 %v413
        %v493 = vunpack.c.l.b16 %v414
        %v494 = vunpack.c.l.b16 %v415
        %v495 = vunpack.c.h.b16 %v415
        %v496 = vunpack.c.l.b16 %v416
        %v497 = vunpack.c.l.b16 %v417
        %v498 = vunpack.c.h.b16 %v417
        %v499 = vunpack.c.l.b16 %v418
        %v500 = vunpack.c.l.b16 %v419
        %v501 = vunpack.c.h.b16 %v419
        %v502 = vunpack.c.l.b16 %v420
        %v503 = vunpack.c.l.b16 %v421
        %v504 = vunpack.c.h.b16 %v421
        %v505 = vunpack.c.l.b16 %v422
        %v506 = vunpack.c.l.b16 %v423
        %v507 = vunpack.c.h.b16 %v423
        %v508 = vunpack.c.l.b16 %v424
        %v509 = vunpack.c.l.b16 %v425
        %v510 = vunpack.c.h.b16 %v425
        %v511 = vunpack.c.l.b16 %v426
        %v512 = vunpack.c.l.b16 %v427
        %v513 = vunpack.c.h.b16 %v427
        %v514 = vunpack.c.l.b16 %v428
        %v515 = vunpack.c.l.b16 %v429
        %v516 = vunpack.c.h.b16 %v429
        %v517 = vunpack.c.l.b16 %v430
        %v518 = vunpack.c.l.b16 %v431
        %v519 = vunpack.c.h.b16 %v431
        %v520 = vunpack.c.l.b16 %v432
        %v521 = vpack.c.b16 %v476, %v473
        %v522 = vpack.c.b16 %v477, %v474
        %v523 = vpack.c.b16 %v478, %v475
        %v524 = vpack.c.b16 %v482, %v479
        %v525 = vpack.c.b16 %v483, %v480
        %v526 = vpack.c.b16 %v484, %v481
        %v527 = vpack.c.b16 %v488, %v485
        %v528 = vpack.c.b16 %v489, %v486
        %v529 = vpack.c.b16 %v490, %v487
        %v530 = vpack.c.b16 %v494, %v491
        %v531 = vpack.c.b16 %v495, %v492
        %v532 = vpack.c.b16 %v496, %v493
        %v533 = vpack.c.b16 %v500, %v497
        %v534 = vpack.c.b16 %v501, %v498
        %v535 = vpack.c.b16 %v502, %v499
        %v536 = vpack.c.b16 %v506, %v503
        %v537 = vpack.c.b16 %v507, %v504
        %v538 = vpack.c.b16 %v508, %v505
        %v539 = vpack.c.b16 %v512, %v509
        %v540 = vpack.c.b16 %v513, %v510
        %v541 = vpack.c.b16 %v514, %v511
        %v542 = vpack.c.b16 %v518, %v515
        %v543 = vpack.c.b16 %v519, %v516
        %v544 = vpack.c.b16 %v520, %v517
        %569 = vmatpush.bf16.msra.mxu0 %v542
        %570 = vmatpush.bf16.msra.mxu0 %v539
        %571 = vmatpush.bf16.msra.mxu0 %v536
        %572 = vmatpush.bf16.msra.mxu0 %v533
        %573 = vmatpush.bf16.msra.mxu0 %v530
        %574 = vmatpush.bf16.msra.mxu0 %v527
        %575 = vmatpush.bf16.msra.mxu0 %v524
        %576 = vmatpush.bf16.msra.mxu0 %v521
        %577 = vmatmul.bf16.gmra.mxu0 %v385
        %v578 = vpop.f32.mrf.mxu0
        %v579 = vadd.f32 %v435, %v578
        %v580 = vpop.f32.mrf.mxu0
        %v581 = vadd.f32 %v435, %v580
        %582 = vmatmul.bf16.gmra.mxu0 %v386
        %v583 = vpop.f32.mrf.mxu0
        %v584 = vadd.f32 %v435, %v583
        %v585 = vpop.f32.mrf.mxu0
        %v586 = vadd.f32 %v435, %v585
        %587 = vmatmul.bf16.gmra.mxu0 %v387
        %v588 = vpop.f32.mrf.mxu0
        %v589 = vadd.f32 %v435, %v588
        %v590 = vpop.f32.mrf.mxu0
        %v591 = vadd.f32 %v435, %v590
        %592 = vmatmul.bf16.gmra.mxu0 %v388
        %v593 = vpop.f32.mrf.mxu0
        %v594 = vadd.f32 %v435, %v593
        %v595 = vpop.f32.mrf.mxu0
        %v596 = vadd.f32 %v435, %v595
        %597 = vmatmul.bf16.gmra.mxu0 %v389
        %v598 = vpop.f32.mrf.mxu0
        %v599 = vadd.f32 %v435, %v598
        %v600 = vpop.f32.mrf.mxu0
        %v601 = vadd.f32 %v435, %v600
        %602 = vmatmul.bf16.gmra.mxu0 %v390
        %v603 = vpop.f32.mrf.mxu0
        %v604 = vadd.f32 %v435, %v603
        %v605 = vpop.f32.mrf.mxu0
        %v606 = vadd.f32 %v435, %v605
        %607 = vmatmul.bf16.gmra.mxu0 %v391
        %v608 = vpop.f32.mrf.mxu0
        %v609 = vadd.f32 %v435, %v608
        %v610 = vpop.f32.mrf.mxu0
        %v611 = vadd.f32 %v435, %v610
        %612 = vmatmul.bf16.gmra.mxu0 %v392
        %v613 = vpop.f32.mrf.mxu0
        %v614 = vadd.f32 %v435, %v613
        %v615 = vpop.f32.mrf.mxu0
        %v616 = vadd.f32 %v435, %v615
        %617 = vmatmul.bf16.gmra.mxu0 %v393
        %v618 = vpop.f32.mrf.mxu0
        %v619 = vadd.f32 %v435, %v618
        %v620 = vpop.f32.mrf.mxu0
        %v621 = vadd.f32 %v435, %v620
        %622 = vmatmul.bf16.gmra.mxu0 %v394
        %v623 = vpop.f32.mrf.mxu0
        %v624 = vadd.f32 %v435, %v623
        %v625 = vpop.f32.mrf.mxu0
        %v626 = vadd.f32 %v435, %v625
        %627 = vmatmul.bf16.gmra.mxu0 %v395
        %v628 = vpop.f32.mrf.mxu0
        %v629 = vadd.f32 %v435, %v628
        %v630 = vpop.f32.mrf.mxu0
        %v631 = vadd.f32 %v435, %v630
        %632 = vmatmul.bf16.gmra.mxu0 %v396
        %v633 = vpop.f32.mrf.mxu0
        %v634 = vadd.f32 %v435, %v633
        %v635 = vpop.f32.mrf.mxu0
        %v636 = vadd.f32 %v435, %v635
        %637 = vmatmul.bf16.gmra.mxu0 %v397
        %v638 = vpop.f32.mrf.mxu0
        %v639 = vadd.f32 %v435, %v638
        %v640 = vpop.f32.mrf.mxu0
        %v641 = vadd.f32 %v435, %v640
        %642 = vmatmul.bf16.gmra.mxu0 %v398
        %v643 = vpop.f32.mrf.mxu0
        %v644 = vadd.f32 %v435, %v643
        %v645 = vpop.f32.mrf.mxu0
        %v646 = vadd.f32 %v435, %v645
        %647 = vmatmul.bf16.gmra.mxu0 %v399
        %v648 = vpop.f32.mrf.mxu0
        %v649 = vadd.f32 %v435, %v648
        %v650 = vpop.f32.mrf.mxu0
        %v651 = vadd.f32 %v435, %v650
        %652 = vmatmul.bf16.gmra.mxu0 %v400
        %v653 = vpop.f32.mrf.mxu0
        %v654 = vadd.f32 %v435, %v653
        %v655 = vpop.f32.mrf.mxu0
        %v656 = vadd.f32 %v435, %v655
        %657 = vdwg.mxu0
        %658 = vmatpush.bf16.msra.mxu0 %v543
        %659 = vmatpush.bf16.msra.mxu0 %v540
        %660 = vmatpush.bf16.msra.mxu0 %v537
        %661 = vmatpush.bf16.msra.mxu0 %v534
        %662 = vmatpush.bf16.msra.mxu0 %v531
        %663 = vmatpush.bf16.msra.mxu0 %v528
        %664 = vmatpush.bf16.msra.mxu0 %v525
        %665 = vmatpush.bf16.msra.mxu0 %v522
        %666 = vmatmul.bf16.gmra.mxu0 %v385
        %v667 = vpop.f32.mrf.mxu0
        %v668 = vadd.f32 %v436, %v667
        %v669 = vpop.f32.mrf.mxu0
        %v670 = vadd.f32 %v436, %v669
        %671 = vmatmul.bf16.gmra.mxu0 %v386
        %v672 = vpop.f32.mrf.mxu0
        %v673 = vadd.f32 %v436, %v672
        %v674 = vpop.f32.mrf.mxu0
        %v675 = vadd.f32 %v436, %v674
        %676 = vmatmul.bf16.gmra.mxu0 %v387
        %v677 = vpop.f32.mrf.mxu0
        %v678 = vadd.f32 %v436, %v677
        %v679 = vpop.f32.mrf.mxu0
        %v680 = vadd.f32 %v436, %v679
        %681 = vmatmul.bf16.gmra.mxu0 %v388
        %v682 = vpop.f32.mrf.mxu0
        %v683 = vadd.f32 %v436, %v682
        %v684 = vpop.f32.mrf.mxu0
        %v685 = vadd.f32 %v436, %v684
        %686 = vmatmul.bf16.gmra.mxu0 %v389
        %v687 = vpop.f32.mrf.mxu0
        %v688 = vadd.f32 %v436, %v687
        %v689 = vpop.f32.mrf.mxu0
        %v690 = vadd.f32 %v436, %v689
        %691 = vmatmul.bf16.gmra.mxu0 %v390
        %v692 = vpop.f32.mrf.mxu0
        %v693 = vadd.f32 %v436, %v692
        %v694 = vpop.f32.mrf.mxu0
        %v695 = vadd.f32 %v436, %v694
        %696 = vmatmul.bf16.gmra.mxu0 %v391
        %v697 = vpop.f32.mrf.mxu0
        %v698 = vadd.f32 %v436, %v697
        %v699 = vpop.f32.mrf.mxu0
        %v700 = vadd.f32 %v436, %v699
        %701 = vmatmul.bf16.gmra.mxu0 %v392
        %v702 = vpop.f32.mrf.mxu0
        %v703 = vadd.f32 %v436, %v702
        %v704 = vpop.f32.mrf.mxu0
        %v705 = vadd.f32 %v436, %v704
        %706 = vmatmul.bf16.gmra.mxu0 %v393
        %v707 = vpop.f32.mrf.mxu0
        %v708 = vadd.f32 %v436, %v707
        %v709 = vpop.f32.mrf.mxu0
        %v710 = vadd.f32 %v436, %v709
        %711 = vmatmul.bf16.gmra.mxu0 %v394
        %v712 = vpop.f32.mrf.mxu0
        %v713 = vadd.f32 %v436, %v712
        %v714 = vpop.f32.mrf.mxu0
        %v715 = vadd.f32 %v436, %v714
        %716 = vmatmul.bf16.gmra.mxu0 %v395
        %v717 = vpop.f32.mrf.mxu0
        %v718 = vadd.f32 %v436, %v717
        %v719 = vpop.f32.mrf.mxu0
        %v720 = vadd.f32 %v436, %v719
        %721 = vmatmul.bf16.gmra.mxu0 %v396
        %v722 = vpop.f32.mrf.mxu0
        %v723 = vadd.f32 %v436, %v722
        %v724 = vpop.f32.mrf.mxu0
        %v725 = vadd.f32 %v436, %v724
        %726 = vmatmul.bf16.gmra.mxu0 %v397
        %v727 = vpop.f32.mrf.mxu0
        %v728 = vadd.f32 %v436, %v727
        %v729 = vpop.f32.mrf.mxu0
        %v730 = vadd.f32 %v436, %v729
        %731 = vmatmul.bf16.gmra.mxu0 %v398
        %v732 = vpop.f32.mrf.mxu0
        %v733 = vadd.f32 %v436, %v732
        %v734 = vpop.f32.mrf.mxu0
        %v735 = vadd.f32 %v436, %v734
        %736 = vmatmul.bf16.gmra.mxu0 %v399
        %v737 = vpop.f32.mrf.mxu0
        %v738 = vadd.f32 %v436, %v737
        %v739 = vpop.f32.mrf.mxu0
        %v740 = vadd.f32 %v436, %v739
        %741 = vmatmul.bf16.gmra.mxu0 %v400
        %v742 = vpop.f32.mrf.mxu0
        %v743 = vadd.f32 %v436, %v742
        %v744 = vpop.f32.mrf.mxu0
        %v745 = vadd.f32 %v436, %v744
        %746 = vdwg.mxu0
        %747 = vmatpush.bf16.msra.mxu0 %v544
        %748 = vmatpush.bf16.msra.mxu0 %v541
        %749 = vmatpush.bf16.msra.mxu0 %v538
        %750 = vmatpush.bf16.msra.mxu0 %v535
        %751 = vmatpush.bf16.msra.mxu0 %v532
        %752 = vmatpush.bf16.msra.mxu0 %v529
        %753 = vmatpush.bf16.msra.mxu0 %v526
        %754 = vmatpush.bf16.msra.mxu0 %v523
        %755 = vmatmul.bf16.gmra.mxu0 %v385
        %v756 = vpop.f32.mrf.mxu0
        %v757 = vadd.f32 %v437, %v756
        %v758 = vpop.f32.mrf.mxu0
        %v759 = vadd.f32 %v437, %v758
        %760 = vmatmul.bf16.gmra.mxu0 %v386
        %v761 = vpop.f32.mrf.mxu0
        %v762 = vadd.f32 %v437, %v761
        %v763 = vpop.f32.mrf.mxu0
        %v764 = vadd.f32 %v437, %v763
        %765 = vmatmul.bf16.gmra.mxu0 %v387
        %v766 = vpop.f32.mrf.mxu0
        %v767 = vadd.f32 %v437, %v766
        %v768 = vpop.f32.mrf.mxu0
        %v769 = vadd.f32 %v437, %v768
        %770 = vmatmul.bf16.gmra.mxu0 %v388
        %v771 = vpop.f32.mrf.mxu0
        %v772 = vadd.f32 %v437, %v771
        %v773 = vpop.f32.mrf.mxu0
        %v774 = vadd.f32 %v437, %v773
        %775 = vmatmul.bf16.gmra.mxu0 %v389
        %v776 = vpop.f32.mrf.mxu0
        %v777 = vadd.f32 %v437, %v776
        %v778 = vpop.f32.mrf.mxu0
        %v779 = vadd.f32 %v437, %v778
        %780 = vmatmul.bf16.gmra.mxu0 %v390
        %v781 = vpop.f32.mrf.mxu0
        %v782 = vadd.f32 %v437, %v781
        %v783 = vpop.f32.mrf.mxu0
        %v784 = vadd.f32 %v437, %v783
        %785 = vmatmul.bf16.gmra.mxu0 %v391
        %v786 = vpop.f32.mrf.mxu0
        %v787 = vadd.f32 %v437, %v786
        %v788 = vpop.f32.mrf.mxu0
        %v789 = vadd.f32 %v437, %v788
        %790 = vmatmul.bf16.gmra.mxu0 %v392
        %v791 = vpop.f32.mrf.mxu0
        %v792 = vadd.f32 %v437, %v791
        %v793 = vpop.f32.mrf.mxu0
        %v794 = vadd.f32 %v437, %v793
        %795 = vmatmul.bf16.gmra.mxu0 %v393
        %v796 = vpop.f32.mrf.mxu0
        %v797 = vadd.f32 %v437, %v796
        %v798 = vpop.f32.mrf.mxu0
        %v799 = vadd.f32 %v437, %v798
        %800 = vmatmul.bf16.gmra.mxu0 %v394
        %v801 = vpop.f32.mrf.mxu0
        %v802 = vadd.f32 %v437, %v801
        %v803 = vpop.f32.mrf.mxu0
        %v804 = vadd.f32 %v437, %v803
        %805 = vmatmul.bf16.gmra.mxu0 %v395
        %v806 = vpop.f32.mrf.mxu0
        %v807 = vadd.f32 %v437, %v806
        %v808 = vpop.f32.mrf.mxu0
        %v809 = vadd.f32 %v437, %v808
        %810 = vmatmul.bf16.gmra.mxu0 %v396
        %v811 = vpop.f32.mrf.mxu0
        %v812 = vadd.f32 %v437, %v811
        %v813 = vpop.f32.mrf.mxu0
        %v814 = vadd.f32 %v437, %v813
        %815 = vmatmul.bf16.gmra.mxu0 %v397
        %v816 = vpop.f32.mrf.mxu0
        %v817 = vadd.f32 %v437, %v816
        %v818 = vpop.f32.mrf.mxu0
        %v819 = vadd.f32 %v437, %v818
        %820 = vmatmul.bf16.gmra.mxu0 %v398
        %v821 = vpop.f32.mrf.mxu0
        %v822 = vadd.f32 %v437, %v821
        %v823 = vpop.f32.mrf.mxu0
        %v824 = vadd.f32 %v437, %v823
        %825 = vmatmul.bf16.gmra.mxu0 %v399
        %v826 = vpop.f32.mrf.mxu0
        %v827 = vadd.f32 %v437, %v826
        %v828 = vpop.f32.mrf.mxu0
        %v829 = vadd.f32 %v437, %v828
        %830 = vmatmul.bf16.gmra.mxu0 %v400
        %v831 = vpop.f32.mrf.mxu0
        %v832 = vadd.f32 %v437, %v831
        %v833 = vpop.f32.mrf.mxu0
        %v834 = vadd.f32 %v437, %v833
        %835 = vdwg.mxu0
        %v836 = vmul.f32 %v579, 0.088388346
        %v837 = vmul.f32 %v581, 0.088388346
        %v838 = vmul.f32 %v584, 0.088388346
        %v839 = vmul.f32 %v586, 0.088388346
        %v840 = vmul.f32 %v589, 0.088388346
        %v841 = vmul.f32 %v591, 0.088388346
        %v842 = vmul.f32 %v594, 0.088388346
        %v843 = vmul.f32 %v596, 0.088388346
        %v844 = vmul.f32 %v599, 0.088388346
        %v845 = vmul.f32 %v601, 0.088388346
        %v846 = vmul.f32 %v604, 0.088388346
        %v847 = vmul.f32 %v606, 0.088388346
        %v848 = vmul.f32 %v609, 0.088388346
        %v849 = vmul.f32 %v611, 0.088388346
        %v850 = vmul.f32 %v614, 0.088388346
        %v851 = vmul.f32 %v616, 0.088388346
        %v852 = vmul.f32 %v619, 0.088388346
        %v853 = vmul.f32 %v621, 0.088388346
        %v854 = vmul.f32 %v624, 0.088388346
        %v855 = vmul.f32 %v626, 0.088388346
        %v856 = vmul.f32 %v629, 0.088388346
        %v857 = vmul.f32 %v631, 0.088388346
        %v858 = vmul.f32 %v634, 0.088388346
        %v859 = vmul.f32 %v636, 0.088388346
        %v860 = vmul.f32 %v639, 0.088388346
        %v861 = vmul.f32 %v641, 0.088388346
        %v862 = vmul.f32 %v644, 0.088388346
        %v863 = vmul.f32 %v646, 0.088388346
        %v864 = vmul.f32 %v649, 0.088388346
        %v865 = vmul.f32 %v651, 0.088388346
        %v866 = vmul.f32 %v654, 0.088388346
        %v867 = vmul.f32 %v656, 0.088388346
        %v868 = vpack.c.bf16 %v836, %v836
        %v869 = vpack.c.bf16 %v837, %v837
        %v870 = vpack.c.bf16 %v838, %v838
        %v871 = vpack.c.bf16 %v839, %v839
        %v872 = vpack.c.bf16 %v840, %v840
        %v873 = vpack.c.bf16 %v841, %v841
        %v874 = vpack.c.bf16 %v842, %v842
        %v875 = vpack.c.bf16 %v843, %v843
        %v876 = vpack.c.bf16 %v844, %v844
        %v877 = vpack.c.bf16 %v845, %v845
        %v878 = vpack.c.bf16 %v846, %v846
        %v879 = vpack.c.bf16 %v847, %v847
        %v880 = vpack.c.bf16 %v848, %v848
        %v881 = vpack.c.bf16 %v849, %v849
        %v882 = vpack.c.bf16 %v850, %v850
        %v883 = vpack.c.bf16 %v851, %v851
        %v884 = vpack.c.bf16 %v852, %v852
        %v885 = vpack.c.bf16 %v853, %v853
        %v886 = vpack.c.bf16 %v854, %v854
        %v887 = vpack.c.bf16 %v855, %v855
        %v888 = vpack.c.bf16 %v856, %v856
        %v889 = vpack.c.bf16 %v857, %v857
        %v890 = vpack.c.bf16 %v858, %v858
        %v891 = vpack.c.bf16 %v859, %v859
        %v892 = vpack.c.bf16 %v860, %v860
        %v893 = vpack.c.bf16 %v861, %v861
        %v894 = vpack.c.bf16 %v862, %v862
        %v895 = vpack.c.bf16 %v863, %v863
        %v896 = vpack.c.bf16 %v864, %v864
        %v897 = vpack.c.bf16 %v865, %v865
        %v898 = vpack.c.bf16 %v866, %v866
        %v899 = vpack.c.bf16 %v867, %v867
        %vm900 = vcmask 257024
        %901 = vst.msk [vmem:[%s331] sm:$0xf] %vm900, %v868
        %902 = vst.msk [vmem:[%s331 + $0x4] sm:$0xf] %vm900, %v869
        %903 = vst.msk [vmem:[%s331 + $0x8] sm:$0xf] %vm900, %v870
        %904 = vst.msk [vmem:[%s331 + $0xc] sm:$0xf] %vm900, %v871
        %905 = vst.msk [vmem:[%s331 + $0x10] sm:$0xf] %vm900, %v872
        %906 = vst.msk [vmem:[%s331 + $0x14] sm:$0xf] %vm900, %v873
        %907 = vst.msk [vmem:[%s331 + $0x18] sm:$0xf] %vm900, %v874
        %908 = vst.msk [vmem:[%s331 + $0x1c] sm:$0xf] %vm900, %v875
        %909 = vst.msk [vmem:[%s331 + $0x20] sm:$0xf] %vm900, %v876
        %910 = vst.msk [vmem:[%s331 + $0x24] sm:$0xf] %vm900, %v877
        %911 = vst.msk [vmem:[%s331 + $0x28] sm:$0xf] %vm900, %v878
        %912 = vst.msk [vmem:[%s331 + $0x2c] sm:$0xf] %vm900, %v879
        %913 = vst.msk [vmem:[%s331 + $0x30] sm:$0xf] %vm900, %v880
        %914 = vst.msk [vmem:[%s331 + $0x34] sm:$0xf] %vm900, %v881
        %915 = vst.msk [vmem:[%s331 + $0x38] sm:$0xf] %vm900, %v882
        %916 = vst.msk [vmem:[%s331 + $0x3c] sm:$0xf] %vm900, %v883
        %917 = vst.msk [vmem:[%s331 + $0x40] sm:$0xf] %vm900, %v884
        %918 = vst.msk [vmem:[%s331 + $0x44] sm:$0xf] %vm900, %v885
        %919 = vst.msk [vmem:[%s331 + $0x48] sm:$0xf] %vm900, %v886
        %920 = vst.msk [vmem:[%s331 + $0x4c] sm:$0xf] %vm900, %v887
        %921 = vst.msk [vmem:[%s331 + $0x50] sm:$0xf] %vm900, %v888
        %922 = vst.msk [vmem:[%s331 + $0x54] sm:$0xf] %vm900, %v889
        %923 = vst.msk [vmem:[%s331 + $0x58] sm:$0xf] %vm900, %v890
        %924 = vst.msk [vmem:[%s331 + $0x5c] sm:$0xf] %vm900, %v891
        %925 = vst.msk [vmem:[%s331 + $0x60] sm:$0xf] %vm900, %v892
        %926 = vst.msk [vmem:[%s331 + $0x64] sm:$0xf] %vm900, %v893
        %927 = vst.msk [vmem:[%s331 + $0x68] sm:$0xf] %vm900, %v894
        %928 = vst.msk [vmem:[%s331 + $0x6c] sm:$0xf] %vm900, %v895
        %929 = vst.msk [vmem:[%s331 + $0x70] sm:$0xf] %vm900, %v896
        %930 = vst.msk [vmem:[%s331 + $0x74] sm:$0xf] %vm900, %v897
        %931 = vst.msk [vmem:[%s331 + $0x78] sm:$0xf] %vm900, %v898
        %932 = vst.msk [vmem:[%s331 + $0x7c] sm:$0xf] %vm900, %v899
        %v933 = vpack.c.bf16 %v668, %v668
        %v934 = vpack.c.bf16 %v670, %v670
        %v935 = vpack.c.bf16 %v673, %v673
        %v936 = vpack.c.bf16 %v675, %v675
        %v937 = vpack.c.bf16 %v678, %v678
        %v938 = vpack.c.bf16 %v680, %v680
        %v939 = vpack.c.bf16 %v683, %v683
        %v940 = vpack.c.bf16 %v685, %v685
        %v941 = vpack.c.bf16 %v688, %v688
        %v942 = vpack.c.bf16 %v690, %v690
        %v943 = vpack.c.bf16 %v693, %v693
        %v944 = vpack.c.bf16 %v695, %v695
        %v945 = vpack.c.bf16 %v698, %v698
        %v946 = vpack.c.bf16 %v700, %v700
        %v947 = vpack.c.bf16 %v703, %v703
        %v948 = vpack.c.bf16 %v705, %v705
        %v949 = vpack.c.bf16 %v708, %v708
        %v950 = vpack.c.bf16 %v710, %v710
        %v951 = vpack.c.bf16 %v713, %v713
        %v952 = vpack.c.bf16 %v715, %v715
        %v953 = vpack.c.bf16 %v718, %v718
        %v954 = vpack.c.bf16 %v720, %v720
        %v955 = vpack.c.bf16 %v723, %v723
        %v956 = vpack.c.bf16 %v725, %v725
        %v957 = vpack.c.bf16 %v728, %v728
        %v958 = vpack.c.bf16 %v730, %v730
        %v959 = vpack.c.bf16 %v733, %v733
        %v960 = vpack.c.bf16 %v735, %v735
        %v961 = vpack.c.bf16 %v738, %v738
        %v962 = vpack.c.bf16 %v740, %v740
        %v963 = vpack.c.bf16 %v743, %v743
        %v964 = vpack.c.bf16 %v745, %v745
        %965 = vst.msk [vmem:[%s341] sm:$0xf] %vm900, %v933
        %966 = vst.msk [vmem:[%s341 + $0x4] sm:$0xf] %vm900, %v934
        %967 = vst.msk [vmem:[%s341 + $0x8] sm:$0xf] %vm900, %v935
        %968 = vst.msk [vmem:[%s341 + $0xc] sm:$0xf] %vm900, %v936
        %969 = vst.msk [vmem:[%s341 + $0x10] sm:$0xf] %vm900, %v937
        %970 = vst.msk [vmem:[%s341 + $0x14] sm:$0xf] %vm900, %v938
        %971 = vst.msk [vmem:[%s341 + $0x18] sm:$0xf] %vm900, %v939
        %972 = vst.msk [vmem:[%s341 + $0x1c] sm:$0xf] %vm900, %v940
        %973 = vst.msk [vmem:[%s341 + $0x20] sm:$0xf] %vm900, %v941
        %974 = vst.msk [vmem:[%s341 + $0x24] sm:$0xf] %vm900, %v942
        %975 = vst.msk [vmem:[%s341 + $0x28] sm:$0xf] %vm900, %v943
        %976 = vst.msk [vmem:[%s341 + $0x2c] sm:$0xf] %vm900, %v944
        %977 = vst.msk [vmem:[%s341 + $0x30] sm:$0xf] %vm900, %v945
        %978 = vst.msk [vmem:[%s341 + $0x34] sm:$0xf] %vm900, %v946
        %979 = vst.msk [vmem:[%s341 + $0x38] sm:$0xf] %vm900, %v947
        %980 = vst.msk [vmem:[%s341 + $0x3c] sm:$0xf] %vm900, %v948
        %981 = vst.msk [vmem:[%s341 + $0x40] sm:$0xf] %vm900, %v949
        %982 = vst.msk [vmem:[%s341 + $0x44] sm:$0xf] %vm900, %v950
        %983 = vst.msk [vmem:[%s341 + $0x48] sm:$0xf] %vm900, %v951
        %984 = vst.msk [vmem:[%s341 + $0x4c] sm:$0xf] %vm900, %v952
        %985 = vst.msk [vmem:[%s341 + $0x50] sm:$0xf] %vm900, %v953
        %986 = vst.msk [vmem:[%s341 + $0x54] sm:$0xf] %vm900, %v954
        %987 = vst.msk [vmem:[%s341 + $0x58] sm:$0xf] %vm900, %v955
        %988 = vst.msk [vmem:[%s341 + $0x5c] sm:$0xf] %vm900, %v956
        %989 = vst.msk [vmem:[%s341 + $0x60] sm:$0xf] %vm900, %v957
        %990 = vst.msk [vmem:[%s341 + $0x64] sm:$0xf] %vm900, %v958
        %991 = vst.msk [vmem:[%s341 + $0x68] sm:$0xf] %vm900, %v959
        %992 = vst.msk [vmem:[%s341 + $0x6c] sm:$0xf] %vm900, %v960
        %993 = vst.msk [vmem:[%s341 + $0x70] sm:$0xf] %vm900, %v961
        %994 = vst.msk [vmem:[%s341 + $0x74] sm:$0xf] %vm900, %v962
        %995 = vst.msk [vmem:[%s341 + $0x78] sm:$0xf] %vm900, %v963
        %996 = vst.msk [vmem:[%s341 + $0x7c] sm:$0xf] %vm900, %v964
        %v997 = vpack.c.bf16 %v757, %v757
        %v998 = vpack.c.bf16 %v759, %v759
        %v999 = vpack.c.bf16 %v762, %v762
        %v1000 = vpack.c.bf16 %v764, %v764
        %v1001 = vpack.c.bf16 %v767, %v767
        %v1002 = vpack.c.bf16 %v769, %v769
        %v1003 = vpack.c.bf16 %v772, %v772
        %v1004 = vpack.c.bf16 %v774, %v774
        %v1005 = vpack.c.bf16 %v777, %v777
        %v1006 = vpack.c.bf16 %v779, %v779
        %v1007 = vpack.c.bf16 %v782, %v782
        %v1008 = vpack.c.bf16 %v784, %v784
        %v1009 = vpack.c.bf16 %v787, %v787
        %v1010 = vpack.c.bf16 %v789, %v789
        %v1011 = vpack.c.bf16 %v792, %v792
        %v1012 = vpack.c.bf16 %v794, %v794
        %v1013 = vpack.c.bf16 %v797, %v797
        %v1014 = vpack.c.bf16 %v799, %v799
        %v1015 = vpack.c.bf16 %v802, %v802
        %v1016 = vpack.c.bf16 %v804, %v804
        %v1017 = vpack.c.bf16 %v807, %v807
        %v1018 = vpack.c.bf16 %v809, %v809
        %v1019 = vpack.c.bf16 %v812, %v812
        %v1020 = vpack.c.bf16 %v814, %v814
        %v1021 = vpack.c.bf16 %v817, %v817
        %v1022 = vpack.c.bf16 %v819, %v819
        %v1023 = vpack.c.bf16 %v822, %v822
        %v1024 = vpack.c.bf16 %v824, %v824
        %v1025 = vpack.c.bf16 %v827, %v827
        %v1026 = vpack.c.bf16 %v829, %v829
        %v1027 = vpack.c.bf16 %v832, %v832
        %v1028 = vpack.c.bf16 %v834, %v834
        %1029 = vst.msk [vmem:[%s351] sm:$0xf] %vm900, %v997
        %1030 = vst.msk [vmem:[%s351 + $0x4] sm:$0xf] %vm900, %v998
        %1031 = vst.msk [vmem:[%s351 + $0x8] sm:$0xf] %vm900, %v999
        %1032 = vst.msk [vmem:[%s351 + $0xc] sm:$0xf] %vm900, %v1000
        %1033 = vst.msk [vmem:[%s351 + $0x10] sm:$0xf] %vm900, %v1001
        %1034 = vst.msk [vmem:[%s351 + $0x14] sm:$0xf] %vm900, %v1002
        %1035 = vst.msk [vmem:[%s351 + $0x18] sm:$0xf] %vm900, %v1003
        %1036 = vst.msk [vmem:[%s351 + $0x1c] sm:$0xf] %vm900, %v1004
        %1037 = vst.msk [vmem:[%s351 + $0x20] sm:$0xf] %vm900, %v1005
        %1038 = vst.msk [vmem:[%s351 + $0x24] sm:$0xf] %vm900, %v1006
        %1039 = vst.msk [vmem:[%s351 + $0x28] sm:$0xf] %vm900, %v1007
        %1040 = vst.msk [vmem:[%s351 + $0x2c] sm:$0xf] %vm900, %v1008
        %1041 = vst.msk [vmem:[%s351 + $0x30] sm:$0xf] %vm900, %v1009
        %1042 = vst.msk [vmem:[%s351 + $0x34] sm:$0xf] %vm900, %v1010
        %1043 = vst.msk [vmem:[%s351 + $0x38] sm:$0xf] %vm900, %v1011
        %1044 = vst.msk [vmem:[%s351 + $0x3c] sm:$0xf] %vm900, %v1012
        %1045 = vst.msk [vmem:[%s351 + $0x40] sm:$0xf] %vm900, %v1013
        %1046 = vst.msk [vmem:[%s351 + $0x44] sm:$0xf] %vm900, %v1014
        %1047 = vst.msk [vmem:[%s351 + $0x48] sm:$0xf] %vm900, %v1015
        %1048 = vst.msk [vmem:[%s351 + $0x4c] sm:$0xf] %vm900, %v1016
        %1049 = vst.msk [vmem:[%s351 + $0x50] sm:$0xf] %vm900, %v1017
        %1050 = vst.msk [vmem:[%s351 + $0x54] sm:$0xf] %vm900, %v1018
        %1051 = vst.msk [vmem:[%s351 + $0x58] sm:$0xf] %vm900, %v1019
        %1052 = vst.msk [vmem:[%s351 + $0x5c] sm:$0xf] %vm900, %v1020
        %1053 = vst.msk [vmem:[%s351 + $0x60] sm:$0xf] %vm900, %v1021
        %1054 = vst.msk [vmem:[%s351 + $0x64] sm:$0xf] %vm900, %v1022
        %1055 = vst.msk [vmem:[%s351 + $0x68] sm:$0xf] %vm900, %v1023
        %1056 = vst.msk [vmem:[%s351 + $0x6c] sm:$0xf] %vm900, %v1024
        %1057 = vst.msk [vmem:[%s351 + $0x70] sm:$0xf] %vm900, %v1025
        %1058 = vst.msk [vmem:[%s351 + $0x74] sm:$0xf] %vm900, %v1026
        %1059 = vst.msk [vmem:[%s351 + $0x78] sm:$0xf] %vm900, %v1027
        %1060 = vst.msk [vmem:[%s351 + $0x7c] sm:$0xf] %vm900, %v1028
        %1093 = vrot.lane.b32.xlu0 %v868, 96
        %v1094 = vpop.permute.xlu0 %1093
        %1095 = vrot.lane.b32.xlu0 %v869, 96
        %v1096 = vpop.permute.xlu0 %1095
        %1097 = vrot.lane.b32.xlu0 %v870, 96
        %v1098 = vpop.permute.xlu0 %1097
        %1099 = vrot.lane.b32.xlu0 %v871, 96
        %v1100 = vpop.permute.xlu0 %1099
        %1101 = vrot.lane.b32.xlu0 %v872, 96
        %v1102 = vpop.permute.xlu0 %1101
        %1103 = vrot.lane.b32.xlu0 %v873, 96
        %v1104 = vpop.permute.xlu0 %1103
        %1105 = vrot.lane.b32.xlu0 %v874, 96
        %v1106 = vpop.permute.xlu0 %1105
        %1107 = vrot.lane.b32.xlu0 %v875, 96
        %v1108 = vpop.permute.xlu0 %1107
        %1109 = vrot.lane.b32.xlu0 %v876, 96
        %v1110 = vpop.permute.xlu0 %1109
        %1111 = vrot.lane.b32.xlu0 %v877, 96
        %v1112 = vpop.permute.xlu0 %1111
        %1113 = vrot.lane.b32.xlu0 %v878, 96
        %v1114 = vpop.permute.xlu0 %1113
        %1115 = vrot.lane.b32.xlu0 %v879, 96
        %v1116 = vpop.permute.xlu0 %1115
        %1117 = vrot.lane.b32.xlu0 %v880, 96
        %v1118 = vpop.permute.xlu0 %1117
        %1119 = vrot.lane.b32.xlu0 %v881, 96
        %v1120 = vpop.permute.xlu0 %1119
        %1121 = vrot.lane.b32.xlu0 %v882, 96
        %v1122 = vpop.permute.xlu0 %1121
        %1123 = vrot.lane.b32.xlu0 %v883, 96
        %v1124 = vpop.permute.xlu0 %1123
        %1125 = vrot.lane.b32.xlu0 %v884, 96
        %v1126 = vpop.permute.xlu0 %1125
        %1127 = vrot.lane.b32.xlu0 %v885, 96
        %v1128 = vpop.permute.xlu0 %1127
        %1129 = vrot.lane.b32.xlu0 %v886, 96
        %v1130 = vpop.permute.xlu0 %1129
        %1131 = vrot.lane.b32.xlu0 %v887, 96
        %v1132 = vpop.permute.xlu0 %1131
        %1133 = vrot.lane.b32.xlu0 %v888, 96
        %v1134 = vpop.permute.xlu0 %1133
        %1135 = vrot.lane.b32.xlu0 %v889, 96
        %v1136 = vpop.permute.xlu0 %1135
        %1137 = vrot.lane.b32.xlu0 %v890, 96
        %v1138 = vpop.permute.xlu0 %1137
        %1139 = vrot.lane.b32.xlu0 %v891, 96
        %v1140 = vpop.permute.xlu0 %1139
        %1141 = vrot.lane.b32.xlu0 %v892, 96
        %v1142 = vpop.permute.xlu0 %1141
        %1143 = vrot.lane.b32.xlu0 %v893, 96
        %v1144 = vpop.permute.xlu0 %1143
        %1145 = vrot.lane.b32.xlu0 %v894, 96
        %v1146 = vpop.permute.xlu0 %1145
        %1147 = vrot.lane.b32.xlu0 %v895, 96
        %v1148 = vpop.permute.xlu0 %1147
        %1149 = vrot.lane.b32.xlu0 %v896, 96
        %v1150 = vpop.permute.xlu0 %1149
        %1151 = vrot.lane.b32.xlu0 %v897, 96
        %v1152 = vpop.permute.xlu0 %1151
        %1153 = vrot.lane.b32.xlu0 %v898, 96
        %v1154 = vpop.permute.xlu0 %1153
        %1155 = vrot.lane.b32.xlu0 %v899, 96
        %v1156 = vpop.permute.xlu0 %1155
        %s1189 = scalar_lea.vmem %s331, 128
        %1190 = vst.msk [vmem:[%s1189] sm:$0xf] %vm900, %v1094
        %1191 = vst.msk [vmem:[%s1189 + $0x4] sm:$0xf] %vm900, %v1096
        %1192 = vst.msk [vmem:[%s1189 + $0x8] sm:$0xf] %vm900, %v1098
        %1193 = vst.msk [vmem:[%s1189 + $0xc] sm:$0xf] %vm900, %v1100
        %1194 = vst.msk [vmem:[%s1189 + $0x10] sm:$0xf] %vm900, %v1102
        %1195 = vst.msk [vmem:[%s1189 + $0x14] sm:$0xf] %vm900, %v1104
        %1196 = vst.msk [vmem:[%s1189 + $0x18] sm:$0xf] %vm900, %v1106
        %1197 = vst.msk [vmem:[%s1189 + $0x1c] sm:$0xf] %vm900, %v1108
        %1198 = vst.msk [vmem:[%s1189 + $0x20] sm:$0xf] %vm900, %v1110
        %1199 = vst.msk [vmem:[%s1189 + $0x24] sm:$0xf] %vm900, %v1112
        %1200 = vst.msk [vmem:[%s1189 + $0x28] sm:$0xf] %vm900, %v1114
        %1201 = vst.msk [vmem:[%s1189 + $0x2c] sm:$0xf] %vm900, %v1116
        %1202 = vst.msk [vmem:[%s1189 + $0x30] sm:$0xf] %vm900, %v1118
        %1203 = vst.msk [vmem:[%s1189 + $0x34] sm:$0xf] %vm900, %v1120
        %1204 = vst.msk [vmem:[%s1189 + $0x38] sm:$0xf] %vm900, %v1122
        %1205 = vst.msk [vmem:[%s1189 + $0x3c] sm:$0xf] %vm900, %v1124
        %1206 = vst.msk [vmem:[%s1189 + $0x40] sm:$0xf] %vm900, %v1126
        %1207 = vst.msk [vmem:[%s1189 + $0x44] sm:$0xf] %vm900, %v1128
        %1208 = vst.msk [vmem:[%s1189 + $0x48] sm:$0xf] %vm900, %v1130
        %1209 = vst.msk [vmem:[%s1189 + $0x4c] sm:$0xf] %vm900, %v1132
        %1210 = vst.msk [vmem:[%s1189 + $0x50] sm:$0xf] %vm900, %v1134
        %1211 = vst.msk [vmem:[%s1189 + $0x54] sm:$0xf] %vm900, %v1136
        %1212 = vst.msk [vmem:[%s1189 + $0x58] sm:$0xf] %vm900, %v1138
        %1213 = vst.msk [vmem:[%s1189 + $0x5c] sm:$0xf] %vm900, %v1140
        %1214 = vst.msk [vmem:[%s1189 + $0x60] sm:$0xf] %vm900, %v1142
        %1215 = vst.msk [vmem:[%s1189 + $0x64] sm:$0xf] %vm900, %v1144
        %1216 = vst.msk [vmem:[%s1189 + $0x68] sm:$0xf] %vm900, %v1146
        %1217 = vst.msk [vmem:[%s1189 + $0x6c] sm:$0xf] %vm900, %v1148
        %1218 = vst.msk [vmem:[%s1189 + $0x70] sm:$0xf] %vm900, %v1150
        %1219 = vst.msk [vmem:[%s1189 + $0x74] sm:$0xf] %vm900, %v1152
        %1220 = vst.msk [vmem:[%s1189 + $0x78] sm:$0xf] %vm900, %v1154
        %1221 = vst.msk [vmem:[%s1189 + $0x7c] sm:$0xf] %vm900, %v1156
        %1254 = vrot.lane.b32.xlu0 %v933, 96
        %v1255 = vpop.permute.xlu0 %1254
        %1256 = vrot.lane.b32.xlu0 %v934, 96
        %v1257 = vpop.permute.xlu0 %1256
        %1258 = vrot.lane.b32.xlu0 %v935, 96
        %v1259 = vpop.permute.xlu0 %1258
        %1260 = vrot.lane.b32.xlu0 %v936, 96
        %v1261 = vpop.permute.xlu0 %1260
        %1262 = vrot.lane.b32.xlu0 %v937, 96
        %v1263 = vpop.permute.xlu0 %1262
        %1264 = vrot.lane.b32.xlu0 %v938, 96
        %v1265 = vpop.permute.xlu0 %1264
        %1266 = vrot.lane.b32.xlu0 %v939, 96
        %v1267 = vpop.permute.xlu0 %1266
        %1268 = vrot.lane.b32.xlu0 %v940, 96
        %v1269 = vpop.permute.xlu0 %1268
        %1270 = vrot.lane.b32.xlu0 %v941, 96
        %v1271 = vpop.permute.xlu0 %1270
        %1272 = vrot.lane.b32.xlu0 %v942, 96
        %v1273 = vpop.permute.xlu0 %1272
        %1274 = vrot.lane.b32.xlu0 %v943, 96
        %v1275 = vpop.permute.xlu0 %1274
        %1276 = vrot.lane.b32.xlu0 %v944, 96
        %v1277 = vpop.permute.xlu0 %1276
        %1278 = vrot.lane.b32.xlu0 %v945, 96
        %v1279 = vpop.permute.xlu0 %1278
        %1280 = vrot.lane.b32.xlu0 %v946, 96
        %v1281 = vpop.permute.xlu0 %1280
        %1282 = vrot.lane.b32.xlu0 %v947, 96
        %v1283 = vpop.permute.xlu0 %1282
        %1284 = vrot.lane.b32.xlu0 %v948, 96
        %v1285 = vpop.permute.xlu0 %1284
        %1286 = vrot.lane.b32.xlu0 %v949, 96
        %v1287 = vpop.permute.xlu0 %1286
        %1288 = vrot.lane.b32.xlu0 %v950, 96
        %v1289 = vpop.permute.xlu0 %1288
        %1290 = vrot.lane.b32.xlu0 %v951, 96
        %v1291 = vpop.permute.xlu0 %1290
        %1292 = vrot.lane.b32.xlu0 %v952, 96
        %v1293 = vpop.permute.xlu0 %1292
        %1294 = vrot.lane.b32.xlu0 %v953, 96
        %v1295 = vpop.permute.xlu0 %1294
        %1296 = vrot.lane.b32.xlu0 %v954, 96
        %v1297 = vpop.permute.xlu0 %1296
        %1298 = vrot.lane.b32.xlu0 %v955, 96
        %v1299 = vpop.permute.xlu0 %1298
        %1300 = vrot.lane.b32.xlu0 %v956, 96
        %v1301 = vpop.permute.xlu0 %1300
        %1302 = vrot.lane.b32.xlu0 %v957, 96
        %v1303 = vpop.permute.xlu0 %1302
        %1304 = vrot.lane.b32.xlu0 %v958, 96
        %v1305 = vpop.permute.xlu0 %1304
        %1306 = vrot.lane.b32.xlu0 %v959, 96
        %v1307 = vpop.permute.xlu0 %1306
        %1308 = vrot.lane.b32.xlu0 %v960, 96
        %v1309 = vpop.permute.xlu0 %1308
        %1310 = vrot.lane.b32.xlu0 %v961, 96
        %v1311 = vpop.permute.xlu0 %1310
        %1312 = vrot.lane.b32.xlu0 %v962, 96
        %v1313 = vpop.permute.xlu0 %1312
        %1314 = vrot.lane.b32.xlu0 %v963, 96
        %v1315 = vpop.permute.xlu0 %1314
        %1316 = vrot.lane.b32.xlu0 %v964, 96
        %v1317 = vpop.permute.xlu0 %1316
        %s1350 = scalar_lea.vmem %s341, 128
        %1351 = vst.msk [vmem:[%s1350] sm:$0xf] %vm900, %v1255
        %1352 = vst.msk [vmem:[%s1350 + $0x4] sm:$0xf] %vm900, %v1257
        %1353 = vst.msk [vmem:[%s1350 + $0x8] sm:$0xf] %vm900, %v1259
        %1354 = vst.msk [vmem:[%s1350 + $0xc] sm:$0xf] %vm900, %v1261
        %1355 = vst.msk [vmem:[%s1350 + $0x10] sm:$0xf] %vm900, %v1263
        %1356 = vst.msk [vmem:[%s1350 + $0x14] sm:$0xf] %vm900, %v1265
        %1357 = vst.msk [vmem:[%s1350 + $0x18] sm:$0xf] %vm900, %v1267
        %1358 = vst.msk [vmem:[%s1350 + $0x1c] sm:$0xf] %vm900, %v1269
        %1359 = vst.msk [vmem:[%s1350 + $0x20] sm:$0xf] %vm900, %v1271
        %1360 = vst.msk [vmem:[%s1350 + $0x24] sm:$0xf] %vm900, %v1273
        %1361 = vst.msk [vmem:[%s1350 + $0x28] sm:$0xf] %vm900, %v1275
        %1362 = vst.msk [vmem:[%s1350 + $0x2c] sm:$0xf] %vm900, %v1277
        %1363 = vst.msk [vmem:[%s1350 + $0x30] sm:$0xf] %vm900, %v1279
        %1364 = vst.msk [vmem:[%s1350 + $0x34] sm:$0xf] %vm900, %v1281
        %1365 = vst.msk [vmem:[%s1350 + $0x38] sm:$0xf] %vm900, %v1283
        %1366 = vst.msk [vmem:[%s1350 + $0x3c] sm:$0xf] %vm900, %v1285
        %1367 = vst.msk [vmem:[%s1350 + $0x40] sm:$0xf] %vm900, %v1287
        %1368 = vst.msk [vmem:[%s1350 + $0x44] sm:$0xf] %vm900, %v1289
        %1369 = vst.msk [vmem:[%s1350 + $0x48] sm:$0xf] %vm900, %v1291
        %1370 = vst.msk [vmem:[%s1350 + $0x4c] sm:$0xf] %vm900, %v1293
        %1371 = vst.msk [vmem:[%s1350 + $0x50] sm:$0xf] %vm900, %v1295
        %1372 = vst.msk [vmem:[%s1350 + $0x54] sm:$0xf] %vm900, %v1297
        %1373 = vst.msk [vmem:[%s1350 + $0x58] sm:$0xf] %vm900, %v1299
        %1374 = vst.msk [vmem:[%s1350 + $0x5c] sm:$0xf] %vm900, %v1301
        %1375 = vst.msk [vmem:[%s1350 + $0x60] sm:$0xf] %vm900, %v1303
        %1376 = vst.msk [vmem:[%s1350 + $0x64] sm:$0xf] %vm900, %v1305
        %1377 = vst.msk [vmem:[%s1350 + $0x68] sm:$0xf] %vm900, %v1307
        %1378 = vst.msk [vmem:[%s1350 + $0x6c] sm:$0xf] %vm900, %v1309
        %1379 = vst.msk [vmem:[%s1350 + $0x70] sm:$0xf] %vm900, %v1311
        %1380 = vst.msk [vmem:[%s1350 + $0x74] sm:$0xf] %vm900, %v1313
        %1381 = vst.msk [vmem:[%s1350 + $0x78] sm:$0xf] %vm900, %v1315
        %1382 = vst.msk [vmem:[%s1350 + $0x7c] sm:$0xf] %vm900, %v1317
        %1415 = vrot.lane.b32.xlu0 %v997, 96
        %v1416 = vpop.permute.xlu0 %1415
        %1417 = vrot.lane.b32.xlu0 %v998, 96
        %v1418 = vpop.permute.xlu0 %1417
        %1419 = vrot.lane.b32.xlu0 %v999, 96
        %v1420 = vpop.permute.xlu0 %1419
        %1421 = vrot.lane.b32.xlu0 %v1000, 96
        %v1422 = vpop.permute.xlu0 %1421
        %1423 = vrot.lane.b32.xlu0 %v1001, 96
        %v1424 = vpop.permute.xlu0 %1423
        %1425 = vrot.lane.b32.xlu0 %v1002, 96
        %v1426 = vpop.permute.xlu0 %1425
        %1427 = vrot.lane.b32.xlu0 %v1003, 96
        %v1428 = vpop.permute.xlu0 %1427
        %1429 = vrot.lane.b32.xlu0 %v1004, 96
        %v1430 = vpop.permute.xlu0 %1429
        %1431 = vrot.lane.b32.xlu0 %v1005, 96
        %v1432 = vpop.permute.xlu0 %1431
        %1433 = vrot.lane.b32.xlu0 %v1006, 96
        %v1434 = vpop.permute.xlu0 %1433
        %1435 = vrot.lane.b32.xlu0 %v1007, 96
        %v1436 = vpop.permute.xlu0 %1435
        %1437 = vrot.lane.b32.xlu0 %v1008, 96
        %v1438 = vpop.permute.xlu0 %1437
        %1439 = vrot.lane.b32.xlu0 %v1009, 96
        %v1440 = vpop.permute.xlu0 %1439
        %1441 = vrot.lane.b32.xlu0 %v1010, 96
        %v1442 = vpop.permute.xlu0 %1441
        %1443 = vrot.lane.b32.xlu0 %v1011, 96
        %v1444 = vpop.permute.xlu0 %1443
        %1445 = vrot.lane.b32.xlu0 %v1012, 96
        %v1446 = vpop.permute.xlu0 %1445
        %1447 = vrot.lane.b32.xlu0 %v1013, 96
        %v1448 = vpop.permute.xlu0 %1447
        %1449 = vrot.lane.b32.xlu0 %v1014, 96
        %v1450 = vpop.permute.xlu0 %1449
        %1451 = vrot.lane.b32.xlu0 %v1015, 96
        %v1452 = vpop.permute.xlu0 %1451
        %1453 = vrot.lane.b32.xlu0 %v1016, 96
        %v1454 = vpop.permute.xlu0 %1453
        %1455 = vrot.lane.b32.xlu0 %v1017, 96
        %v1456 = vpop.permute.xlu0 %1455
        %1457 = vrot.lane.b32.xlu0 %v1018, 96
        %v1458 = vpop.permute.xlu0 %1457
        %1459 = vrot.lane.b32.xlu0 %v1019, 96
        %v1460 = vpop.permute.xlu0 %1459
        %1461 = vrot.lane.b32.xlu0 %v1020, 96
        %v1462 = vpop.permute.xlu0 %1461
        %1463 = vrot.lane.b32.xlu0 %v1021, 96
        %v1464 = vpop.permute.xlu0 %1463
        %1465 = vrot.lane.b32.xlu0 %v1022, 96
        %v1466 = vpop.permute.xlu0 %1465
        %1467 = vrot.lane.b32.xlu0 %v1023, 96
        %v1468 = vpop.permute.xlu0 %1467
        %1469 = vrot.lane.b32.xlu0 %v1024, 96
        %v1470 = vpop.permute.xlu0 %1469
        %1471 = vrot.lane.b32.xlu0 %v1025, 96
        %v1472 = vpop.permute.xlu0 %1471
        %1473 = vrot.lane.b32.xlu0 %v1026, 96
        %v1474 = vpop.permute.xlu0 %1473
        %1475 = vrot.lane.b32.xlu0 %v1027, 96
        %v1476 = vpop.permute.xlu0 %1475
        %1477 = vrot.lane.b32.xlu0 %v1028, 96
        %v1478 = vpop.permute.xlu0 %1477
        %s1511 = scalar_lea.vmem %s351, 128
        %1512 = vst.msk [vmem:[%s1511] sm:$0xf] %vm900, %v1416
        %1513 = vst.msk [vmem:[%s1511 + $0x4] sm:$0xf] %vm900, %v1418
        %1514 = vst.msk [vmem:[%s1511 + $0x8] sm:$0xf] %vm900, %v1420
        %1515 = vst.msk [vmem:[%s1511 + $0xc] sm:$0xf] %vm900, %v1422
        %1516 = vst.msk [vmem:[%s1511 + $0x10] sm:$0xf] %vm900, %v1424
        %1517 = vst.msk [vmem:[%s1511 + $0x14] sm:$0xf] %vm900, %v1426
        %1518 = vst.msk [vmem:[%s1511 + $0x18] sm:$0xf] %vm900, %v1428
        %1519 = vst.msk [vmem:[%s1511 + $0x1c] sm:$0xf] %vm900, %v1430
        %1520 = vst.msk [vmem:[%s1511 + $0x20] sm:$0xf] %vm900, %v1432
        %1521 = vst.msk [vmem:[%s1511 + $0x24] sm:$0xf] %vm900, %v1434
        %1522 = vst.msk [vmem:[%s1511 + $0x28] sm:$0xf] %vm900, %v1436
        %1523 = vst.msk [vmem:[%s1511 + $0x2c] sm:$0xf] %vm900, %v1438
        %1524 = vst.msk [vmem:[%s1511 + $0x30] sm:$0xf] %vm900, %v1440
        %1525 = vst.msk [vmem:[%s1511 + $0x34] sm:$0xf] %vm900, %v1442
        %1526 = vst.msk [vmem:[%s1511 + $0x38] sm:$0xf] %vm900, %v1444
        %1527 = vst.msk [vmem:[%s1511 + $0x3c] sm:$0xf] %vm900, %v1446
        %1528 = vst.msk [vmem:[%s1511 + $0x40] sm:$0xf] %vm900, %v1448
        %1529 = vst.msk [vmem:[%s1511 + $0x44] sm:$0xf] %vm900, %v1450
        %1530 = vst.msk [vmem:[%s1511 + $0x48] sm:$0xf] %vm900, %v1452
        %1531 = vst.msk [vmem:[%s1511 + $0x4c] sm:$0xf] %vm900, %v1454
        %1532 = vst.msk [vmem:[%s1511 + $0x50] sm:$0xf] %vm900, %v1456
        %1533 = vst.msk [vmem:[%s1511 + $0x54] sm:$0xf] %vm900, %v1458
        %1534 = vst.msk [vmem:[%s1511 + $0x58] sm:$0xf] %vm900, %v1460
        %1535 = vst.msk [vmem:[%s1511 + $0x5c] sm:$0xf] %vm900, %v1462
        %1536 = vst.msk [vmem:[%s1511 + $0x60] sm:$0xf] %vm900, %v1464
        %1537 = vst.msk [vmem:[%s1511 + $0x64] sm:$0xf] %vm900, %v1466
        %1538 = vst.msk [vmem:[%s1511 + $0x68] sm:$0xf] %vm900, %v1468
        %1539 = vst.msk [vmem:[%s1511 + $0x6c] sm:$0xf] %vm900, %v1470
        %1540 = vst.msk [vmem:[%s1511 + $0x70] sm:$0xf] %vm900, %v1472
        %1541 = vst.msk [vmem:[%s1511 + $0x74] sm:$0xf] %vm900, %v1474
        %1542 = vst.msk [vmem:[%s1511 + $0x78] sm:$0xf] %vm900, %v1476
        %1543 = vst.msk [vmem:[%s1511 + $0x7c] sm:$0xf] %vm900, %v1478
        %1544 = vrot.lane.b32.xlu0 %v868, 64
        %v1545 = vpop.permute.xlu0 %1544
        %1546 = vrot.lane.b32.xlu0 %v869, 64
        %v1547 = vpop.permute.xlu0 %1546
        %1548 = vrot.lane.b32.xlu0 %v870, 64
        %v1549 = vpop.permute.xlu0 %1548
        %1550 = vrot.lane.b32.xlu0 %v871, 64
        %v1551 = vpop.permute.xlu0 %1550
        %1552 = vrot.lane.b32.xlu0 %v872, 64
        %v1553 = vpop.permute.xlu0 %1552
        %1554 = vrot.lane.b32.xlu0 %v873, 64
        %v1555 = vpop.permute.xlu0 %1554
        %1556 = vrot.lane.b32.xlu0 %v874, 64
        %v1557 = vpop.permute.xlu0 %1556
        %1558 = vrot.lane.b32.xlu0 %v875, 64
        %v1559 = vpop.permute.xlu0 %1558
        %1560 = vrot.lane.b32.xlu0 %v876, 64
        %v1561 = vpop.permute.xlu0 %1560
        %1562 = vrot.lane.b32.xlu0 %v877, 64
        %v1563 = vpop.permute.xlu0 %1562
        %1564 = vrot.lane.b32.xlu0 %v878, 64
        %v1565 = vpop.permute.xlu0 %1564
        %1566 = vrot.lane.b32.xlu0 %v879, 64
        %v1567 = vpop.permute.xlu0 %1566
        %1568 = vrot.lane.b32.xlu0 %v880, 64
        %v1569 = vpop.permute.xlu0 %1568
        %1570 = vrot.lane.b32.xlu0 %v881, 64
        %v1571 = vpop.permute.xlu0 %1570
        %1572 = vrot.lane.b32.xlu0 %v882, 64
        %v1573 = vpop.permute.xlu0 %1572
        %1574 = vrot.lane.b32.xlu0 %v883, 64
        %v1575 = vpop.permute.xlu0 %1574
        %1576 = vrot.lane.b32.xlu0 %v884, 64
        %v1577 = vpop.permute.xlu0 %1576
        %1578 = vrot.lane.b32.xlu0 %v885, 64
        %v1579 = vpop.permute.xlu0 %1578
        %1580 = vrot.lane.b32.xlu0 %v886, 64
        %v1581 = vpop.permute.xlu0 %1580
        %1582 = vrot.lane.b32.xlu0 %v887, 64
        %v1583 = vpop.permute.xlu0 %1582
        %1584 = vrot.lane.b32.xlu0 %v888, 64
        %v1585 = vpop.permute.xlu0 %1584
        %1586 = vrot.lane.b32.xlu0 %v889, 64
        %v1587 = vpop.permute.xlu0 %1586
        %1588 = vrot.lane.b32.xlu0 %v890, 64
        %v1589 = vpop.permute.xlu0 %1588
        %1590 = vrot.lane.b32.xlu0 %v891, 64
        %v1591 = vpop.permute.xlu0 %1590
        %1592 = vrot.lane.b32.xlu0 %v892, 64
        %v1593 = vpop.permute.xlu0 %1592
        %1594 = vrot.lane.b32.xlu0 %v893, 64
        %v1595 = vpop.permute.xlu0 %1594
        %1596 = vrot.lane.b32.xlu0 %v894, 64
        %v1597 = vpop.permute.xlu0 %1596
        %1598 = vrot.lane.b32.xlu0 %v895, 64
        %v1599 = vpop.permute.xlu0 %1598
        %1600 = vrot.lane.b32.xlu0 %v896, 64
        %v1601 = vpop.permute.xlu0 %1600
        %1602 = vrot.lane.b32.xlu0 %v897, 64
        %v1603 = vpop.permute.xlu0 %1602
        %1604 = vrot.lane.b32.xlu0 %v898, 64
        %v1605 = vpop.permute.xlu0 %1604
        %1606 = vrot.lane.b32.xlu0 %v899, 64
        %v1607 = vpop.permute.xlu0 %1606
        %s1640 = scalar_lea.vmem %s331, 256
        %1641 = vst.msk [vmem:[%s1640] sm:$0xf] %vm900, %v1545
        %1642 = vst.msk [vmem:[%s1640 + $0x4] sm:$0xf] %vm900, %v1547
        %1643 = vst.msk [vmem:[%s1640 + $0x8] sm:$0xf] %vm900, %v1549
        %1644 = vst.msk [vmem:[%s1640 + $0xc] sm:$0xf] %vm900, %v1551
        %1645 = vst.msk [vmem:[%s1640 + $0x10] sm:$0xf] %vm900, %v1553
        %1646 = vst.msk [vmem:[%s1640 + $0x14] sm:$0xf] %vm900, %v1555
        %1647 = vst.msk [vmem:[%s1640 + $0x18] sm:$0xf] %vm900, %v1557
        %1648 = vst.msk [vmem:[%s1640 + $0x1c] sm:$0xf] %vm900, %v1559
        %1649 = vst.msk [vmem:[%s1640 + $0x20] sm:$0xf] %vm900, %v1561
        %1650 = vst.msk [vmem:[%s1640 + $0x24] sm:$0xf] %vm900, %v1563
        %1651 = vst.msk [vmem:[%s1640 + $0x28] sm:$0xf] %vm900, %v1565
        %1652 = vst.msk [vmem:[%s1640 + $0x2c] sm:$0xf] %vm900, %v1567
        %1653 = vst.msk [vmem:[%s1640 + $0x30] sm:$0xf] %vm900, %v1569
        %1654 = vst.msk [vmem:[%s1640 + $0x34] sm:$0xf] %vm900, %v1571
        %1655 = vst.msk [vmem:[%s1640 + $0x38] sm:$0xf] %vm900, %v1573
        %1656 = vst.msk [vmem:[%s1640 + $0x3c] sm:$0xf] %vm900, %v1575
        %1657 = vst.msk [vmem:[%s1640 + $0x40] sm:$0xf] %vm900, %v1577
        %1658 = vst.msk [vmem:[%s1640 + $0x44] sm:$0xf] %vm900, %v1579
        %1659 = vst.msk [vmem:[%s1640 + $0x48] sm:$0xf] %vm900, %v1581
        %1660 = vst.msk [vmem:[%s1640 + $0x4c] sm:$0xf] %vm900, %v1583
        %1661 = vst.msk [vmem:[%s1640 + $0x50] sm:$0xf] %vm900, %v1585
        %1662 = vst.msk [vmem:[%s1640 + $0x54] sm:$0xf] %vm900, %v1587
        %1663 = vst.msk [vmem:[%s1640 + $0x58] sm:$0xf] %vm900, %v1589
        %1664 = vst.msk [vmem:[%s1640 + $0x5c] sm:$0xf] %vm900, %v1591
        %1665 = vst.msk [vmem:[%s1640 + $0x60] sm:$0xf] %vm900, %v1593
        %1666 = vst.msk [vmem:[%s1640 + $0x64] sm:$0xf] %vm900, %v1595
        %1667 = vst.msk [vmem:[%s1640 + $0x68] sm:$0xf] %vm900, %v1597
        %1668 = vst.msk [vmem:[%s1640 + $0x6c] sm:$0xf] %vm900, %v1599
        %1669 = vst.msk [vmem:[%s1640 + $0x70] sm:$0xf] %vm900, %v1601
        %1670 = vst.msk [vmem:[%s1640 + $0x74] sm:$0xf] %vm900, %v1603
        %1671 = vst.msk [vmem:[%s1640 + $0x78] sm:$0xf] %vm900, %v1605
        %1672 = vst.msk [vmem:[%s1640 + $0x7c] sm:$0xf] %vm900, %v1607
        %1673 = vrot.lane.b32.xlu0 %v933, 64
        %v1674 = vpop.permute.xlu0 %1673
        %1675 = vrot.lane.b32.xlu0 %v934, 64
        %v1676 = vpop.permute.xlu0 %1675
        %1677 = vrot.lane.b32.xlu0 %v935, 64
        %v1678 = vpop.permute.xlu0 %1677
        %1679 = vrot.lane.b32.xlu0 %v936, 64
        %v1680 = vpop.permute.xlu0 %1679
        %1681 = vrot.lane.b32.xlu0 %v937, 64
        %v1682 = vpop.permute.xlu0 %1681
        %1683 = vrot.lane.b32.xlu0 %v938, 64
        %v1684 = vpop.permute.xlu0 %1683
        %1685 = vrot.lane.b32.xlu0 %v939, 64
        %v1686 = vpop.permute.xlu0 %1685
        %1687 = vrot.lane.b32.xlu0 %v940, 64
        %v1688 = vpop.permute.xlu0 %1687
        %1689 = vrot.lane.b32.xlu0 %v941, 64
        %v1690 = vpop.permute.xlu0 %1689
        %1691 = vrot.lane.b32.xlu0 %v942, 64
        %v1692 = vpop.permute.xlu0 %1691
        %1693 = vrot.lane.b32.xlu0 %v943, 64
        %v1694 = vpop.permute.xlu0 %1693
        %1695 = vrot.lane.b32.xlu0 %v944, 64
        %v1696 = vpop.permute.xlu0 %1695
        %1697 = vrot.lane.b32.xlu0 %v945, 64
        %v1698 = vpop.permute.xlu0 %1697
        %1699 = vrot.lane.b32.xlu0 %v946, 64
        %v1700 = vpop.permute.xlu0 %1699
        %1701 = vrot.lane.b32.xlu0 %v947, 64
        %v1702 = vpop.permute.xlu0 %1701
        %1703 = vrot.lane.b32.xlu0 %v948, 64
        %v1704 = vpop.permute.xlu0 %1703
        %1705 = vrot.lane.b32.xlu0 %v949, 64
        %v1706 = vpop.permute.xlu0 %1705
        %1707 = vrot.lane.b32.xlu0 %v950, 64
        %v1708 = vpop.permute.xlu0 %1707
        %1709 = vrot.lane.b32.xlu0 %v951, 64
        %v1710 = vpop.permute.xlu0 %1709
        %1711 = vrot.lane.b32.xlu0 %v952, 64
        %v1712 = vpop.permute.xlu0 %1711
        %1713 = vrot.lane.b32.xlu0 %v953, 64
        %v1714 = vpop.permute.xlu0 %1713
        %1715 = vrot.lane.b32.xlu0 %v954, 64
        %v1716 = vpop.permute.xlu0 %1715
        %1717 = vrot.lane.b32.xlu0 %v955, 64
        %v1718 = vpop.permute.xlu0 %1717
        %1719 = vrot.lane.b32.xlu0 %v956, 64
        %v1720 = vpop.permute.xlu0 %1719
        %1721 = vrot.lane.b32.xlu0 %v957, 64
        %v1722 = vpop.permute.xlu0 %1721
        %1723 = vrot.lane.b32.xlu0 %v958, 64
        %v1724 = vpop.permute.xlu0 %1723
        %1725 = vrot.lane.b32.xlu0 %v959, 64
        %v1726 = vpop.permute.xlu0 %1725
        %1727 = vrot.lane.b32.xlu0 %v960, 64
        %v1728 = vpop.permute.xlu0 %1727
        %1729 = vrot.lane.b32.xlu0 %v961, 64
        %v1730 = vpop.permute.xlu0 %1729
        %1731 = vrot.lane.b32.xlu0 %v962, 64
        %v1732 = vpop.permute.xlu0 %1731
        %1733 = vrot.lane.b32.xlu0 %v963, 64
        %v1734 = vpop.permute.xlu0 %1733
        %1735 = vrot.lane.b32.xlu0 %v964, 64
        %v1736 = vpop.permute.xlu0 %1735
        %s1769 = scalar_lea.vmem %s341, 256
        %1770 = vst.msk [vmem:[%s1769] sm:$0xf] %vm900, %v1674
        %1771 = vst.msk [vmem:[%s1769 + $0x4] sm:$0xf] %vm900, %v1676
        %1772 = vst.msk [vmem:[%s1769 + $0x8] sm:$0xf] %vm900, %v1678
        %1773 = vst.msk [vmem:[%s1769 + $0xc] sm:$0xf] %vm900, %v1680
        %1774 = vst.msk [vmem:[%s1769 + $0x10] sm:$0xf] %vm900, %v1682
        %1775 = vst.msk [vmem:[%s1769 + $0x14] sm:$0xf] %vm900, %v1684
        %1776 = vst.msk [vmem:[%s1769 + $0x18] sm:$0xf] %vm900, %v1686
        %1777 = vst.msk [vmem:[%s1769 + $0x1c] sm:$0xf] %vm900, %v1688
        %1778 = vst.msk [vmem:[%s1769 + $0x20] sm:$0xf] %vm900, %v1690
        %1779 = vst.msk [vmem:[%s1769 + $0x24] sm:$0xf] %vm900, %v1692
        %1780 = vst.msk [vmem:[%s1769 + $0x28] sm:$0xf] %vm900, %v1694
        %1781 = vst.msk [vmem:[%s1769 + $0x2c] sm:$0xf] %vm900, %v1696
        %1782 = vst.msk [vmem:[%s1769 + $0x30] sm:$0xf] %vm900, %v1698
        %1783 = vst.msk [vmem:[%s1769 + $0x34] sm:$0xf] %vm900, %v1700
        %1784 = vst.msk [vmem:[%s1769 + $0x38] sm:$0xf] %vm900, %v1702
        %1785 = vst.msk [vmem:[%s1769 + $0x3c] sm:$0xf] %vm900, %v1704
        %1786 = vst.msk [vmem:[%s1769 + $0x40] sm:$0xf] %vm900, %v1706
        %1787 = vst.msk [vmem:[%s1769 + $0x44] sm:$0xf] %vm900, %v1708
        %1788 = vst.msk [vmem:[%s1769 + $0x48] sm:$0xf] %vm900, %v1710
        %1789 = vst.msk [vmem:[%s1769 + $0x4c] sm:$0xf] %vm900, %v1712
        %1790 = vst.msk [vmem:[%s1769 + $0x50] sm:$0xf] %vm900, %v1714
        %1791 = vst.msk [vmem:[%s1769 + $0x54] sm:$0xf] %vm900, %v1716
        %1792 = vst.msk [vmem:[%s1769 + $0x58] sm:$0xf] %vm900, %v1718
        %1793 = vst.msk [vmem:[%s1769 + $0x5c] sm:$0xf] %vm900, %v1720
        %1794 = vst.msk [vmem:[%s1769 + $0x60] sm:$0xf] %vm900, %v1722
        %1795 = vst.msk [vmem:[%s1769 + $0x64] sm:$0xf] %vm900, %v1724
        %1796 = vst.msk [vmem:[%s1769 + $0x68] sm:$0xf] %vm900, %v1726
        %1797 = vst.msk [vmem:[%s1769 + $0x6c] sm:$0xf] %vm900, %v1728
        %1798 = vst.msk [vmem:[%s1769 + $0x70] sm:$0xf] %vm900, %v1730
        %1799 = vst.msk [vmem:[%s1769 + $0x74] sm:$0xf] %vm900, %v1732
        %1800 = vst.msk [vmem:[%s1769 + $0x78] sm:$0xf] %vm900, %v1734
        %1801 = vst.msk [vmem:[%s1769 + $0x7c] sm:$0xf] %vm900, %v1736
        %1802 = vrot.lane.b32.xlu0 %v997, 64
        %v1803 = vpop.permute.xlu0 %1802
        %1804 = vrot.lane.b32.xlu0 %v998, 64
        %v1805 = vpop.permute.xlu0 %1804
        %1806 = vrot.lane.b32.xlu0 %v999, 64
        %v1807 = vpop.permute.xlu0 %1806
        %1808 = vrot.lane.b32.xlu0 %v1000, 64
        %v1809 = vpop.permute.xlu0 %1808
        %1810 = vrot.lane.b32.xlu0 %v1001, 64
        %v1811 = vpop.permute.xlu0 %1810
        %1812 = vrot.lane.b32.xlu0 %v1002, 64
        %v1813 = vpop.permute.xlu0 %1812
        %1814 = vrot.lane.b32.xlu0 %v1003, 64
        %v1815 = vpop.permute.xlu0 %1814
        %1816 = vrot.lane.b32.xlu0 %v1004, 64
        %v1817 = vpop.permute.xlu0 %1816
        %1818 = vrot.lane.b32.xlu0 %v1005, 64
        %v1819 = vpop.permute.xlu0 %1818
        %1820 = vrot.lane.b32.xlu0 %v1006, 64
        %v1821 = vpop.permute.xlu0 %1820
        %1822 = vrot.lane.b32.xlu0 %v1007, 64
        %v1823 = vpop.permute.xlu0 %1822
        %1824 = vrot.lane.b32.xlu0 %v1008, 64
        %v1825 = vpop.permute.xlu0 %1824
        %1826 = vrot.lane.b32.xlu0 %v1009, 64
        %v1827 = vpop.permute.xlu0 %1826
        %1828 = vrot.lane.b32.xlu0 %v1010, 64
        %v1829 = vpop.permute.xlu0 %1828
        %1830 = vrot.lane.b32.xlu0 %v1011, 64
        %v1831 = vpop.permute.xlu0 %1830
        %1832 = vrot.lane.b32.xlu0 %v1012, 64
        %v1833 = vpop.permute.xlu0 %1832
        %1834 = vrot.lane.b32.xlu0 %v1013, 64
        %v1835 = vpop.permute.xlu0 %1834
        %1836 = vrot.lane.b32.xlu0 %v1014, 64
        %v1837 = vpop.permute.xlu0 %1836
        %1838 = vrot.lane.b32.xlu0 %v1015, 64
        %v1839 = vpop.permute.xlu0 %1838
        %1840 = vrot.lane.b32.xlu0 %v1016, 64
        %v1841 = vpop.permute.xlu0 %1840
        %1842 = vrot.lane.b32.xlu0 %v1017, 64
        %v1843 = vpop.permute.xlu0 %1842
        %1844 = vrot.lane.b32.xlu0 %v1018, 64
        %v1845 = vpop.permute.xlu0 %1844
        %1846 = vrot.lane.b32.xlu0 %v1019, 64
        %v1847 = vpop.permute.xlu0 %1846
        %1848 = vrot.lane.b32.xlu0 %v1020, 64
        %v1849 = vpop.permute.xlu0 %1848
        %1850 = vrot.lane.b32.xlu0 %v1021, 64
        %v1851 = vpop.permute.xlu0 %1850
        %1852 = vrot.lane.b32.xlu0 %v1022, 64
        %v1853 = vpop.permute.xlu0 %1852
        %1854 = vrot.lane.b32.xlu0 %v1023, 64
        %v1855 = vpop.permute.xlu0 %1854
        %1856 = vrot.lane.b32.xlu0 %v1024, 64
        %v1857 = vpop.permute.xlu0 %1856
        %1858 = vrot.lane.b32.xlu0 %v1025, 64
        %v1859 = vpop.permute.xlu0 %1858
        %1860 = vrot.lane.b32.xlu0 %v1026, 64
        %v1861 = vpop.permute.xlu0 %1860
        %1862 = vrot.lane.b32.xlu0 %v1027, 64
        %v1863 = vpop.permute.xlu0 %1862
        %1864 = vrot.lane.b32.xlu0 %v1028, 64
        %v1865 = vpop.permute.xlu0 %1864
        %s1898 = scalar_lea.vmem %s351, 256
        %1899 = vst.msk [vmem:[%s1898] sm:$0xf] %vm900, %v1803
        %1900 = vst.msk [vmem:[%s1898 + $0x4] sm:$0xf] %vm900, %v1805
        %1901 = vst.msk [vmem:[%s1898 + $0x8] sm:$0xf] %vm900, %v1807
        %1902 = vst.msk [vmem:[%s1898 + $0xc] sm:$0xf] %vm900, %v1809
        %1903 = vst.msk [vmem:[%s1898 + $0x10] sm:$0xf] %vm900, %v1811
        %1904 = vst.msk [vmem:[%s1898 + $0x14] sm:$0xf] %vm900, %v1813
        %1905 = vst.msk [vmem:[%s1898 + $0x18] sm:$0xf] %vm900, %v1815
        %1906 = vst.msk [vmem:[%s1898 + $0x1c] sm:$0xf] %vm900, %v1817
        %1907 = vst.msk [vmem:[%s1898 + $0x20] sm:$0xf] %vm900, %v1819
        %1908 = vst.msk [vmem:[%s1898 + $0x24] sm:$0xf] %vm900, %v1821
        %1909 = vst.msk [vmem:[%s1898 + $0x28] sm:$0xf] %vm900, %v1823
        %1910 = vst.msk [vmem:[%s1898 + $0x2c] sm:$0xf] %vm900, %v1825
        %1911 = vst.msk [vmem:[%s1898 + $0x30] sm:$0xf] %vm900, %v1827
        %1912 = vst.msk [vmem:[%s1898 + $0x34] sm:$0xf] %vm900, %v1829
        %1913 = vst.msk [vmem:[%s1898 + $0x38] sm:$0xf] %vm900, %v1831
        %1914 = vst.msk [vmem:[%s1898 + $0x3c] sm:$0xf] %vm900, %v1833
        %1915 = vst.msk [vmem:[%s1898 + $0x40] sm:$0xf] %vm900, %v1835
        %1916 = vst.msk [vmem:[%s1898 + $0x44] sm:$0xf] %vm900, %v1837
        %1917 = vst.msk [vmem:[%s1898 + $0x48] sm:$0xf] %vm900, %v1839
        %1918 = vst.msk [vmem:[%s1898 + $0x4c] sm:$0xf] %vm900, %v1841
        %1919 = vst.msk [vmem:[%s1898 + $0x50] sm:$0xf] %vm900, %v1843
        %1920 = vst.msk [vmem:[%s1898 + $0x54] sm:$0xf] %vm900, %v1845
        %1921 = vst.msk [vmem:[%s1898 + $0x58] sm:$0xf] %vm900, %v1847
        %1922 = vst.msk [vmem:[%s1898 + $0x5c] sm:$0xf] %vm900, %v1849
        %1923 = vst.msk [vmem:[%s1898 + $0x60] sm:$0xf] %vm900, %v1851
        %1924 = vst.msk [vmem:[%s1898 + $0x64] sm:$0xf] %vm900, %v1853
        %1925 = vst.msk [vmem:[%s1898 + $0x68] sm:$0xf] %vm900, %v1855
        %1926 = vst.msk [vmem:[%s1898 + $0x6c] sm:$0xf] %vm900, %v1857
        %1927 = vst.msk [vmem:[%s1898 + $0x70] sm:$0xf] %vm900, %v1859
        %1928 = vst.msk [vmem:[%s1898 + $0x74] sm:$0xf] %vm900, %v1861
        %1929 = vst.msk [vmem:[%s1898 + $0x78] sm:$0xf] %vm900, %v1863
        %1930 = vst.msk [vmem:[%s1898 + $0x7c] sm:$0xf] %vm900, %v1865
        %1931 = vrot.lane.b32.xlu0 %v868, 32
        %v1932 = vpop.permute.xlu0 %1931
        %1933 = vrot.lane.b32.xlu0 %v869, 32
        %v1934 = vpop.permute.xlu0 %1933
        %1935 = vrot.lane.b32.xlu0 %v870, 32
        %v1936 = vpop.permute.xlu0 %1935
        %1937 = vrot.lane.b32.xlu0 %v871, 32
        %v1938 = vpop.permute.xlu0 %1937
        %1939 = vrot.lane.b32.xlu0 %v872, 32
        %v1940 = vpop.permute.xlu0 %1939
        %1941 = vrot.lane.b32.xlu0 %v873, 32
        %v1942 = vpop.permute.xlu0 %1941
        %1943 = vrot.lane.b32.xlu0 %v874, 32
        %v1944 = vpop.permute.xlu0 %1943
        %1945 = vrot.lane.b32.xlu0 %v875, 32
        %v1946 = vpop.permute.xlu0 %1945
        %1947 = vrot.lane.b32.xlu0 %v876, 32
        %v1948 = vpop.permute.xlu0 %1947
        %1949 = vrot.lane.b32.xlu0 %v877, 32
        %v1950 = vpop.permute.xlu0 %1949
        %1951 = vrot.lane.b32.xlu0 %v878, 32
        %v1952 = vpop.permute.xlu0 %1951
        %1953 = vrot.lane.b32.xlu0 %v879, 32
        %v1954 = vpop.permute.xlu0 %1953
        %1955 = vrot.lane.b32.xlu0 %v880, 32
        %v1956 = vpop.permute.xlu0 %1955
        %1957 = vrot.lane.b32.xlu0 %v881, 32
        %v1958 = vpop.permute.xlu0 %1957
        %1959 = vrot.lane.b32.xlu0 %v882, 32
        %v1960 = vpop.permute.xlu0 %1959
        %1961 = vrot.lane.b32.xlu0 %v883, 32
        %v1962 = vpop.permute.xlu0 %1961
        %1963 = vrot.lane.b32.xlu0 %v884, 32
        %v1964 = vpop.permute.xlu0 %1963
        %1965 = vrot.lane.b32.xlu0 %v885, 32
        %v1966 = vpop.permute.xlu0 %1965
        %1967 = vrot.lane.b32.xlu0 %v886, 32
        %v1968 = vpop.permute.xlu0 %1967
        %1969 = vrot.lane.b32.xlu0 %v887, 32
        %v1970 = vpop.permute.xlu0 %1969
        %1971 = vrot.lane.b32.xlu0 %v888, 32
        %v1972 = vpop.permute.xlu0 %1971
        %1973 = vrot.lane.b32.xlu0 %v889, 32
        %v1974 = vpop.permute.xlu0 %1973
        %1975 = vrot.lane.b32.xlu0 %v890, 32
        %v1976 = vpop.permute.xlu0 %1975
        %1977 = vrot.lane.b32.xlu0 %v891, 32
        %v1978 = vpop.permute.xlu0 %1977
        %1979 = vrot.lane.b32.xlu0 %v892, 32
        %v1980 = vpop.permute.xlu0 %1979
        %1981 = vrot.lane.b32.xlu0 %v893, 32
        %v1982 = vpop.permute.xlu0 %1981
        %1983 = vrot.lane.b32.xlu0 %v894, 32
        %v1984 = vpop.permute.xlu0 %1983
        %1985 = vrot.lane.b32.xlu0 %v895, 32
        %v1986 = vpop.permute.xlu0 %1985
        %1987 = vrot.lane.b32.xlu0 %v896, 32
        %v1988 = vpop.permute.xlu0 %1987
        %1989 = vrot.lane.b32.xlu0 %v897, 32
        %v1990 = vpop.permute.xlu0 %1989
        %1991 = vrot.lane.b32.xlu0 %v898, 32
        %v1992 = vpop.permute.xlu0 %1991
        %1993 = vrot.lane.b32.xlu0 %v899, 32
        %v1994 = vpop.permute.xlu0 %1993
        %s2027 = scalar_lea.vmem %s331, 384
        %2028 = vst.msk [vmem:[%s2027] sm:$0xf] %vm900, %v1932
        %2029 = vst.msk [vmem:[%s2027 + $0x4] sm:$0xf] %vm900, %v1934
        %2030 = vst.msk [vmem:[%s2027 + $0x8] sm:$0xf] %vm900, %v1936
        %2031 = vst.msk [vmem:[%s2027 + $0xc] sm:$0xf] %vm900, %v1938
        %2032 = vst.msk [vmem:[%s2027 + $0x10] sm:$0xf] %vm900, %v1940
        %2033 = vst.msk [vmem:[%s2027 + $0x14] sm:$0xf] %vm900, %v1942
        %2034 = vst.msk [vmem:[%s2027 + $0x18] sm:$0xf] %vm900, %v1944
        %2035 = vst.msk [vmem:[%s2027 + $0x1c] sm:$0xf] %vm900, %v1946
        %2036 = vst.msk [vmem:[%s2027 + $0x20] sm:$0xf] %vm900, %v1948
        %2037 = vst.msk [vmem:[%s2027 + $0x24] sm:$0xf] %vm900, %v1950
        %2038 = vst.msk [vmem:[%s2027 + $0x28] sm:$0xf] %vm900, %v1952
        %2039 = vst.msk [vmem:[%s2027 + $0x2c] sm:$0xf] %vm900, %v1954
        %2040 = vst.msk [vmem:[%s2027 + $0x30] sm:$0xf] %vm900, %v1956
        %2041 = vst.msk [vmem:[%s2027 + $0x34] sm:$0xf] %vm900, %v1958
        %2042 = vst.msk [vmem:[%s2027 + $0x38] sm:$0xf] %vm900, %v1960
        %2043 = vst.msk [vmem:[%s2027 + $0x3c] sm:$0xf] %vm900, %v1962
        %2044 = vst.msk [vmem:[%s2027 + $0x40] sm:$0xf] %vm900, %v1964
        %2045 = vst.msk [vmem:[%s2027 + $0x44] sm:$0xf] %vm900, %v1966
        %2046 = vst.msk [vmem:[%s2027 + $0x48] sm:$0xf] %vm900, %v1968
        %2047 = vst.msk [vmem:[%s2027 + $0x4c] sm:$0xf] %vm900, %v1970
        %2048 = vst.msk [vmem:[%s2027 + $0x50] sm:$0xf] %vm900, %v1972
        %2049 = vst.msk [vmem:[%s2027 + $0x54] sm:$0xf] %vm900, %v1974
        %2050 = vst.msk [vmem:[%s2027 + $0x58] sm:$0xf] %vm900, %v1976
        %2051 = vst.msk [vmem:[%s2027 + $0x5c] sm:$0xf] %vm900, %v1978
        %2052 = vst.msk [vmem:[%s2027 + $0x60] sm:$0xf] %vm900, %v1980
        %2053 = vst.msk [vmem:[%s2027 + $0x64] sm:$0xf] %vm900, %v1982
        %2054 = vst.msk [vmem:[%s2027 + $0x68] sm:$0xf] %vm900, %v1984
        %2055 = vst.msk [vmem:[%s2027 + $0x6c] sm:$0xf] %vm900, %v1986
        %2056 = vst.msk [vmem:[%s2027 + $0x70] sm:$0xf] %vm900, %v1988
        %2057 = vst.msk [vmem:[%s2027 + $0x74] sm:$0xf] %vm900, %v1990
        %2058 = vst.msk [vmem:[%s2027 + $0x78] sm:$0xf] %vm900, %v1992
        %2059 = vst.msk [vmem:[%s2027 + $0x7c] sm:$0xf] %vm900, %v1994
        %2060 = vrot.lane.b32.xlu0 %v933, 32
        %v2061 = vpop.permute.xlu0 %2060
        %2062 = vrot.lane.b32.xlu0 %v934, 32
        %v2063 = vpop.permute.xlu0 %2062
        %2064 = vrot.lane.b32.xlu0 %v935, 32
        %v2065 = vpop.permute.xlu0 %2064
        %2066 = vrot.lane.b32.xlu0 %v936, 32
        %v2067 = vpop.permute.xlu0 %2066
        %2068 = vrot.lane.b32.xlu0 %v937, 32
        %v2069 = vpop.permute.xlu0 %2068
        %2070 = vrot.lane.b32.xlu0 %v938, 32
        %v2071 = vpop.permute.xlu0 %2070
        %2072 = vrot.lane.b32.xlu0 %v939, 32
        %v2073 = vpop.permute.xlu0 %2072
        %2074 = vrot.lane.b32.xlu0 %v940, 32
        %v2075 = vpop.permute.xlu0 %2074
        %2076 = vrot.lane.b32.xlu0 %v941, 32
        %v2077 = vpop.permute.xlu0 %2076
        %2078 = vrot.lane.b32.xlu0 %v942, 32
        %v2079 = vpop.permute.xlu0 %2078
        %2080 = vrot.lane.b32.xlu0 %v943, 32
        %v2081 = vpop.permute.xlu0 %2080
        %2082 = vrot.lane.b32.xlu0 %v944, 32
        %v2083 = vpop.permute.xlu0 %2082
        %2084 = vrot.lane.b32.xlu0 %v945, 32
        %v2085 = vpop.permute.xlu0 %2084
        %2086 = vrot.lane.b32.xlu0 %v946, 32
        %v2087 = vpop.permute.xlu0 %2086
        %2088 = vrot.lane.b32.xlu0 %v947, 32
        %v2089 = vpop.permute.xlu0 %2088
        %2090 = vrot.lane.b32.xlu0 %v948, 32
        %v2091 = vpop.permute.xlu0 %2090
        %2092 = vrot.lane.b32.xlu0 %v949, 32
        %v2093 = vpop.permute.xlu0 %2092
        %2094 = vrot.lane.b32.xlu0 %v950, 32
        %v2095 = vpop.permute.xlu0 %2094
        %2096 = vrot.lane.b32.xlu0 %v951, 32
        %v2097 = vpop.permute.xlu0 %2096
        %2098 = vrot.lane.b32.xlu0 %v952, 32
        %v2099 = vpop.permute.xlu0 %2098
        %2100 = vrot.lane.b32.xlu0 %v953, 32
        %v2101 = vpop.permute.xlu0 %2100
        %2102 = vrot.lane.b32.xlu0 %v954, 32
        %v2103 = vpop.permute.xlu0 %2102
        %2104 = vrot.lane.b32.xlu0 %v955, 32
        %v2105 = vpop.permute.xlu0 %2104
        %2106 = vrot.lane.b32.xlu0 %v956, 32
        %v2107 = vpop.permute.xlu0 %2106
        %2108 = vrot.lane.b32.xlu0 %v957, 32
        %v2109 = vpop.permute.xlu0 %2108
        %2110 = vrot.lane.b32.xlu0 %v958, 32
        %v2111 = vpop.permute.xlu0 %2110
        %2112 = vrot.lane.b32.xlu0 %v959, 32
        %v2113 = vpop.permute.xlu0 %2112
        %2114 = vrot.lane.b32.xlu0 %v960, 32
        %v2115 = vpop.permute.xlu0 %2114
        %2116 = vrot.lane.b32.xlu0 %v961, 32
        %v2117 = vpop.permute.xlu0 %2116
        %2118 = vrot.lane.b32.xlu0 %v962, 32
        %v2119 = vpop.permute.xlu0 %2118
        %2120 = vrot.lane.b32.xlu0 %v963, 32
        %v2121 = vpop.permute.xlu0 %2120
        %2122 = vrot.lane.b32.xlu0 %v964, 32
        %v2123 = vpop.permute.xlu0 %2122
        %s2156 = scalar_lea.vmem %s341, 384
        %2157 = vst.msk [vmem:[%s2156] sm:$0xf] %vm900, %v2061
        %2158 = vst.msk [vmem:[%s2156 + $0x4] sm:$0xf] %vm900, %v2063
        %2159 = vst.msk [vmem:[%s2156 + $0x8] sm:$0xf] %vm900, %v2065
        %2160 = vst.msk [vmem:[%s2156 + $0xc] sm:$0xf] %vm900, %v2067
        %2161 = vst.msk [vmem:[%s2156 + $0x10] sm:$0xf] %vm900, %v2069
        %2162 = vst.msk [vmem:[%s2156 + $0x14] sm:$0xf] %vm900, %v2071
        %2163 = vst.msk [vmem:[%s2156 + $0x18] sm:$0xf] %vm900, %v2073
        %2164 = vst.msk [vmem:[%s2156 + $0x1c] sm:$0xf] %vm900, %v2075
        %2165 = vst.msk [vmem:[%s2156 + $0x20] sm:$0xf] %vm900, %v2077
        %2166 = vst.msk [vmem:[%s2156 + $0x24] sm:$0xf] %vm900, %v2079
        %2167 = vst.msk [vmem:[%s2156 + $0x28] sm:$0xf] %vm900, %v2081
        %2168 = vst.msk [vmem:[%s2156 + $0x2c] sm:$0xf] %vm900, %v2083
        %2169 = vst.msk [vmem:[%s2156 + $0x30] sm:$0xf] %vm900, %v2085
        %2170 = vst.msk [vmem:[%s2156 + $0x34] sm:$0xf] %vm900, %v2087
        %2171 = vst.msk [vmem:[%s2156 + $0x38] sm:$0xf] %vm900, %v2089
        %2172 = vst.msk [vmem:[%s2156 + $0x3c] sm:$0xf] %vm900, %v2091
        %2173 = vst.msk [vmem:[%s2156 + $0x40] sm:$0xf] %vm900, %v2093
        %2174 = vst.msk [vmem:[%s2156 + $0x44] sm:$0xf] %vm900, %v2095
        %2175 = vst.msk [vmem:[%s2156 + $0x48] sm:$0xf] %vm900, %v2097
        %2176 = vst.msk [vmem:[%s2156 + $0x4c] sm:$0xf] %vm900, %v2099
        %2177 = vst.msk [vmem:[%s2156 + $0x50] sm:$0xf] %vm900, %v2101
        %2178 = vst.msk [vmem:[%s2156 + $0x54] sm:$0xf] %vm900, %v2103
        %2179 = vst.msk [vmem:[%s2156 + $0x58] sm:$0xf] %vm900, %v2105
        %2180 = vst.msk [vmem:[%s2156 + $0x5c] sm:$0xf] %vm900, %v2107
        %2181 = vst.msk [vmem:[%s2156 + $0x60] sm:$0xf] %vm900, %v2109
        %2182 = vst.msk [vmem:[%s2156 + $0x64] sm:$0xf] %vm900, %v2111
        %2183 = vst.msk [vmem:[%s2156 + $0x68] sm:$0xf] %vm900, %v2113
        %2184 = vst.msk [vmem:[%s2156 + $0x6c] sm:$0xf] %vm900, %v2115
        %2185 = vst.msk [vmem:[%s2156 + $0x70] sm:$0xf] %vm900, %v2117
        %2186 = vst.msk [vmem:[%s2156 + $0x74] sm:$0xf] %vm900, %v2119
        %2187 = vst.msk [vmem:[%s2156 + $0x78] sm:$0xf] %vm900, %v2121
        %2188 = vst.msk [vmem:[%s2156 + $0x7c] sm:$0xf] %vm900, %v2123
        %2189 = vrot.lane.b32.xlu0 %v997, 32
        %v2190 = vpop.permute.xlu0 %2189
        %2191 = vrot.lane.b32.xlu0 %v998, 32
        %v2192 = vpop.permute.xlu0 %2191
        %2193 = vrot.lane.b32.xlu0 %v999, 32
        %v2194 = vpop.permute.xlu0 %2193
        %2195 = vrot.lane.b32.xlu0 %v1000, 32
        %v2196 = vpop.permute.xlu0 %2195
        %2197 = vrot.lane.b32.xlu0 %v1001, 32
        %v2198 = vpop.permute.xlu0 %2197
        %2199 = vrot.lane.b32.xlu0 %v1002, 32
        %v2200 = vpop.permute.xlu0 %2199
        %2201 = vrot.lane.b32.xlu0 %v1003, 32
        %v2202 = vpop.permute.xlu0 %2201
        %2203 = vrot.lane.b32.xlu0 %v1004, 32
        %v2204 = vpop.permute.xlu0 %2203
        %2205 = vrot.lane.b32.xlu0 %v1005, 32
        %v2206 = vpop.permute.xlu0 %2205
        %2207 = vrot.lane.b32.xlu0 %v1006, 32
        %v2208 = vpop.permute.xlu0 %2207
        %2209 = vrot.lane.b32.xlu0 %v1007, 32
        %v2210 = vpop.permute.xlu0 %2209
        %2211 = vrot.lane.b32.xlu0 %v1008, 32
        %v2212 = vpop.permute.xlu0 %2211
        %2213 = vrot.lane.b32.xlu0 %v1009, 32
        %v2214 = vpop.permute.xlu0 %2213
        %2215 = vrot.lane.b32.xlu0 %v1010, 32
        %v2216 = vpop.permute.xlu0 %2215
        %2217 = vrot.lane.b32.xlu0 %v1011, 32
        %v2218 = vpop.permute.xlu0 %2217
        %2219 = vrot.lane.b32.xlu0 %v1012, 32
        %v2220 = vpop.permute.xlu0 %2219
        %2221 = vrot.lane.b32.xlu0 %v1013, 32
        %v2222 = vpop.permute.xlu0 %2221
        %2223 = vrot.lane.b32.xlu0 %v1014, 32
        %v2224 = vpop.permute.xlu0 %2223
        %2225 = vrot.lane.b32.xlu0 %v1015, 32
        %v2226 = vpop.permute.xlu0 %2225
        %2227 = vrot.lane.b32.xlu0 %v1016, 32
        %v2228 = vpop.permute.xlu0 %2227
        %2229 = vrot.lane.b32.xlu0 %v1017, 32
        %v2230 = vpop.permute.xlu0 %2229
        %2231 = vrot.lane.b32.xlu0 %v1018, 32
        %v2232 = vpop.permute.xlu0 %2231
        %2233 = vrot.lane.b32.xlu0 %v1019, 32
        %v2234 = vpop.permute.xlu0 %2233
        %2235 = vrot.lane.b32.xlu0 %v1020, 32
        %v2236 = vpop.permute.xlu0 %2235
        %2237 = vrot.lane.b32.xlu0 %v1021, 32
        %v2238 = vpop.permute.xlu0 %2237
        %2239 = vrot.lane.b32.xlu0 %v1022, 32
        %v2240 = vpop.permute.xlu0 %2239
        %2241 = vrot.lane.b32.xlu0 %v1023, 32
        %v2242 = vpop.permute.xlu0 %2241
        %2243 = vrot.lane.b32.xlu0 %v1024, 32
        %v2244 = vpop.permute.xlu0 %2243
        %2245 = vrot.lane.b32.xlu0 %v1025, 32
        %v2246 = vpop.permute.xlu0 %2245
        %2247 = vrot.lane.b32.xlu0 %v1026, 32
        %v2248 = vpop.permute.xlu0 %2247
        %2249 = vrot.lane.b32.xlu0 %v1027, 32
        %v2250 = vpop.permute.xlu0 %2249
        %2251 = vrot.lane.b32.xlu0 %v1028, 32
        %v2252 = vpop.permute.xlu0 %2251
        %s2285 = scalar_lea.vmem %s351, 384
        %2286 = vst.msk [vmem:[%s2285] sm:$0xf] %vm900, %v2190
        %2287 = vst.msk [vmem:[%s2285 + $0x4] sm:$0xf] %vm900, %v2192
        %2288 = vst.msk [vmem:[%s2285 + $0x8] sm:$0xf] %vm900, %v2194
        %2289 = vst.msk [vmem:[%s2285 + $0xc] sm:$0xf] %vm900, %v2196
        %2290 = vst.msk [vmem:[%s2285 + $0x10] sm:$0xf] %vm900, %v2198
        %2291 = vst.msk [vmem:[%s2285 + $0x14] sm:$0xf] %vm900, %v2200
        %2292 = vst.msk [vmem:[%s2285 + $0x18] sm:$0xf] %vm900, %v2202
        %2293 = vst.msk [vmem:[%s2285 + $0x1c] sm:$0xf] %vm900, %v2204
        %2294 = vst.msk [vmem:[%s2285 + $0x20] sm:$0xf] %vm900, %v2206
        %2295 = vst.msk [vmem:[%s2285 + $0x24] sm:$0xf] %vm900, %v2208
        %2296 = vst.msk [vmem:[%s2285 + $0x28] sm:$0xf] %vm900, %v2210
        %2297 = vst.msk [vmem:[%s2285 + $0x2c] sm:$0xf] %vm900, %v2212
        %2298 = vst.msk [vmem:[%s2285 + $0x30] sm:$0xf] %vm900, %v2214
        %2299 = vst.msk [vmem:[%s2285 + $0x34] sm:$0xf] %vm900, %v2216
        %2300 = vst.msk [vmem:[%s2285 + $0x38] sm:$0xf] %vm900, %v2218
        %2301 = vst.msk [vmem:[%s2285 + $0x3c] sm:$0xf] %vm900, %v2220
        %2302 = vst.msk [vmem:[%s2285 + $0x40] sm:$0xf] %vm900, %v2222
        %2303 = vst.msk [vmem:[%s2285 + $0x44] sm:$0xf] %vm900, %v2224
        %2304 = vst.msk [vmem:[%s2285 + $0x48] sm:$0xf] %vm900, %v2226
        %2305 = vst.msk [vmem:[%s2285 + $0x4c] sm:$0xf] %vm900, %v2228
        %2306 = vst.msk [vmem:[%s2285 + $0x50] sm:$0xf] %vm900, %v2230
        %2307 = vst.msk [vmem:[%s2285 + $0x54] sm:$0xf] %vm900, %v2232
        %2308 = vst.msk [vmem:[%s2285 + $0x58] sm:$0xf] %vm900, %v2234
        %2309 = vst.msk [vmem:[%s2285 + $0x5c] sm:$0xf] %vm900, %v2236
        %2310 = vst.msk [vmem:[%s2285 + $0x60] sm:$0xf] %vm900, %v2238
        %2311 = vst.msk [vmem:[%s2285 + $0x64] sm:$0xf] %vm900, %v2240
        %2312 = vst.msk [vmem:[%s2285 + $0x68] sm:$0xf] %vm900, %v2242
        %2313 = vst.msk [vmem:[%s2285 + $0x6c] sm:$0xf] %vm900, %v2244
        %2314 = vst.msk [vmem:[%s2285 + $0x70] sm:$0xf] %vm900, %v2246
        %2315 = vst.msk [vmem:[%s2285 + $0x74] sm:$0xf] %vm900, %v2248
        %2316 = vst.msk [vmem:[%s2285 + $0x78] sm:$0xf] %vm900, %v2250
        %2317 = vst.msk [vmem:[%s2285 + $0x7c] sm:$0xf] %vm900, %v2252
        %s2318 = smul.u32 32, %s26
        %p2319 = scmp.lt.s32.totalorder %s25, 1
        %s2320 = scalar_select %p2319, %s25, 1
        %p2321 = scmp.lt.s32.totalorder %s2318, 31
        %s2322 = scalar_select %p2321, %s2318, 31
        %s2323 = smul.addr %s2320, 128
        %s2324 = sadd.s32 %s2322, %s2323
        %s2325 = smul.addr %s2324, 4
        %s2326 = scalar_lea.vmem %s3, %s2325
        %s2327 = smul.u32 32, %s26
        %p2328 = scmp.lt.s32.totalorder %s25, 1
        %s2329 = scalar_select %p2328, %s25, 1
        %p2330 = scmp.lt.s32.totalorder %s2327, 31
        %s2331 = scalar_select %p2330, %s2327, 31
        %s2332 = smul.addr %s2329, 128
        %s2333 = sadd.s32 %s2331, %s2332
        %s2334 = smul.addr %s2333, 4
        %s2335 = scalar_lea.vmem %s4, %s2334
        %s2336 = smul.u32 32, %s26
        %p2337 = scmp.lt.s32.totalorder %s25, 1
        %s2338 = scalar_select %p2337, %s25, 1
        %p2339 = scmp.lt.s32.totalorder %s2336, 31
        %s2340 = scalar_select %p2339, %s2336, 31
        %s2341 = smul.addr %s2338, 128
        %s2342 = sadd.s32 %s2340, %s2341
        %s2343 = smul.addr %s2342, 4
        %s2344 = scalar_lea.vmem %s5, %s2343
        // Predicated region
        $region45: #{tpu_custom_call.1} parent=31 // pred_check
          %p2345 = pneg %p123
        $region46: #{tpu_custom_call.1} parent=31 // pred_check_branch
          %2347 = sbr.rel (%p2345) target = $region48
        $region47: #{tpu_custom_call.1} parent=31 // pred_region
          %s2348 = smul.u32 32, %s26
        $region48: #{tpu_custom_call.1} parent=31 // pred_fallthru
          _
        // Predicated region
        $region49: #{tpu_custom_call.1} parent=31 // pred_check
          %p2349 = pneg %p151
        $region50: #{tpu_custom_call.1} parent=31 // pred_check_branch
          %2351 = sbr.rel (%p2349) target = $region52
        $region51: #{tpu_custom_call.1} parent=31 // pred_region
          %s2352 = smul.u32 32, %s26
        $region52: #{tpu_custom_call.1} parent=31 // pred_fallthru
          _
        // Predicated region
        $region53: #{tpu_custom_call.1} parent=31 // pred_check
          %p2353 = pneg %p179
        $region54: #{tpu_custom_call.1} parent=31 // pred_check_branch
          %2355 = sbr.rel (%p2353) target = $region56
        $region55: #{tpu_custom_call.1} parent=31 // pred_region
          %s2356 = smul.u32 32, %s26
        $region56: #{tpu_custom_call.1} parent=31 // pred_fallthru
          _
      $region32: #{tpu_custom_call.1} parent=5 // pred_fallthru
        _
      %p2357 = scmp.le.s32.totalorder 2, %s16
      // Predicated region
      $region57: #{tpu_custom_call.1} parent=5 // pred_check
        %p2358 = pneg %p2357
      $region58: #{tpu_custom_call.1} parent=5 // pred_check_branch
        %2360 = sbr.rel (%p2358) target = $region60
      $region59: #{tpu_custom_call.1} parent=5 // pred_region
        %s2361 = ssub.s32 %s16, 2
        // Predicated region
        $region61: #{tpu_custom_call.1} parent=59 // pred_check
          %p2362 = pneg %p129
        $region62: #{tpu_custom_call.1} parent=59 // pred_check_branch
          %2364 = sbr.rel (%p2362) target = $region64
        $region63: #{tpu_custom_call.1} parent=59 // pred_region
          %s2365 = smul.u32 32, %s28
          %p2366 = scmp.lt.s32.totalorder %s27, 1
          %s2367 = scalar_select %p2366, %s27, 1
          %p2368 = scmp.lt.s32.totalorder %s2365, 31
          %s2369 = scalar_select %p2368, %s2365, 31
          %s2370 = smul.addr %s2367, 128
          %s2371 = sadd.s32 %s2369, %s2370
          %s2372 = smul.addr %s2371, 4
          %s2373 = scalar_lea.vmem %s3, %s2372
        $region64: #{tpu_custom_call.1} parent=59 // pred_fallthru
          _
        // Predicated region
        $region65: #{tpu_custom_call.1} parent=59 // pred_check
          %p2374 = pneg %p157
        $region66: #{tpu_custom_call.1} parent=59 // pred_check_branch
          %2376 = sbr.rel (%p2374) target = $region68
        $region67: #{tpu_custom_call.1} parent=59 // pred_region
          %s2377 = smul.u32 32, %s28
          %p2378 = scmp.lt.s32.totalorder %s27, 1
          %s2379 = scalar_select %p2378, %s27, 1
          %p2380 = scmp.lt.s32.totalorder %s2377, 31
          %s2381 = scalar_select %p2380, %s2377, 31
          %s2382 = smul.addr %s2379, 128
          %s2383 = sadd.s32 %s2381, %s2382
          %s2384 = smul.addr %s2383, 4
          %s2385 = scalar_lea.vmem %s4, %s2384
        $region68: #{tpu_custom_call.1} parent=59 // pred_fallthru
          _
        // Predicated region
        $region69: #{tpu_custom_call.1} parent=59 // pred_check
          %p2386 = pneg %p185
        $region70: #{tpu_custom_call.1} parent=59 // pred_check_branch
          %2388 = sbr.rel (%p2386) target = $region72
        $region71: #{tpu_custom_call.1} parent=59 // pred_region
          %s2389 = smul.u32 32, %s28
          %p2390 = scmp.lt.s32.totalorder %s27, 1
          %s2391 = scalar_select %p2390, %s27, 1
          %p2392 = scmp.lt.s32.totalorder %s2389, 31
          %s2393 = scalar_select %p2392, %s2389, 31
          %s2394 = smul.addr %s2391, 128
          %s2395 = sadd.s32 %s2393, %s2394
          %s2396 = smul.addr %s2395, 4
          %s2397 = scalar_lea.vmem %s5, %s2396
        $region72: #{tpu_custom_call.1} parent=59 // pred_fallthru
          _
      $region60: #{tpu_custom_call.1} parent=5 // pred_fallthru
        _
    $region6: #{tpu_custom_call.1} parent=1 // loop_footer
      %s20 = sadd.s32 1, %s16
    $region7: #{tpu_custom_call.1} parent=1 // loop_footer_branch
      %15 = sbr.rel target = $region3
    $region8: #{tpu_custom_call.1} parent=1 // loop_exit
      _
    %2398 = vsyncpa [#allocation3], 1
    %s2399 = scalar_lea.sflag [#allocation3], 1
    %2400 = vsyncpa %s2399, 1
    %2401 = vsyncpa [#allocation5], 1

</llo_original>
